<compile_context>
chip_gen: v7x
topology: tpu7x:2x2x1
jax: 0.10.0
libtpu: 0.0.40
codegen_flags: <defaults>
</compile_context>

<pallas_src>
import functools

import jax
import jax.numpy as jnp
import numpy as np
from jax import lax
from jax.experimental import pallas as pl
from jax.experimental.pallas import tpu as pltpu


# ------------------------------ fused MHA kernel -----------------------------

def _mha_fused_kernel(q_ref, k_ref, v_ref,
                      wq_ref, bq_ref, wk_ref, bk_ref,
                      wv_ref, bv_ref, wo_ref, bo_ref,
                      *rest, head_size, head_dim, has_mask):
    """One grid step = one batch element; all heads computed in this step."""
    if has_mask:
        m_ref, o_ref, aw_ref = rest
    else:
        o_ref, aw_ref = rest
        m_ref = None

    # Contract dim 1 of both operands: y = x @ W^T with no transpose op.
    dn = (((1,), (1,)), ((), ()))

    xq = q_ref[0]            # (Lq, H)
    xk = k_ref[0]            # (Lk, H)
    xv = v_ref[0]            # (Lk, H)

    qw = lax.dot_general(xq, wq_ref[...], dn,
                         preferred_element_type=jnp.float32) + bq_ref[...]
    kw = lax.dot_general(xk, wk_ref[...], dn,
                         preferred_element_type=jnp.float32) + bk_ref[...]
    vw = lax.dot_general(xv, wv_ref[...], dn,
                         preferred_element_type=jnp.float32) + bv_ref[...]

    # Fold 1/sqrt(d_k) into the (Lq, H) query activations (cheaper than
    # scaling every (Lq, Lk) score tile per head).
    qw = qw * jnp.float32(1.0 / np.sqrt(head_dim))

    head_outs = []
    head_ws = []
    for h in range(head_size):                       # unrolled; head_size static
        sl = slice(h * head_dim, (h + 1) * head_dim)
        q_h = qw[:, sl]                              # (Lq, hd)
        k_h = kw[:, sl]                              # (Lk, hd)
        v_h = vw[:, sl]                              # (Lk, hd)

        s = lax.dot_general(q_h, k_h, dn,            # q_h @ k_h^T -> (Lq, Lk)
                            preferred_element_type=jnp.float32)
        if m_ref is not None:
            # Matches the PyTorch spec exactly: scores += mask * -1e30
            # (mask entries are expected to be {0,1}, 1 = disallowed).
            s = s + m_ref[0, h] * jnp.float32(-1e30)

        # Numerically-stable softmax over the key axis (f32 throughout).
        mx = jnp.max(s, axis=-1, keepdims=True)
        p = jnp.exp(s - mx)
        # Exact division (not approx reciprocal) to preserve the 2e-5 match
        # against the f32 reference.
        w = p * pl.reciprocal(jnp.sum(p, axis=-1, keepdims=True), approx=False)

        head_ws.append(w)
        head_outs.append(jnp.dot(w, v_h, preferred_element_type=jnp.float32))

    # One store for all heads' attention weights (instead of head_size stores).
    aw_ref[0] = jnp.stack(head_ws, axis=0).astype(aw_ref.dtype)

    # Merge heads back onto the lane (hidden) axis in-VMEM -> (Lq, H).
    ctx = jnp.concatenate(head_outs, axis=-1)
    final = lax.dot_general(ctx, wo_ref[...], dn,
                            preferred_element_type=jnp.float32) + bo_ref[...]
    o_ref[0] = final.astype(o_ref.dtype)


# --------------------------- MultiheadAttention fwd --------------------------

def init_params(key, hidden_size):
    ks = jax.random.split(key, 8)
    std = 1.0 / np.sqrt(hidden_size)
    p = {}
    for i, name in enumerate(["wq", "wk", "wv", "wo"]):
        p[f"{name}_w"] = jax.random.uniform(
            ks[2 * i], (hidden_size, hidden_size), jnp.float32, -std, std)
        p[f"{name}_b"] = jax.random.uniform(
            ks[2 * i + 1], (hidden_size,), jnp.float32, -std, std)
    return p


@functools.partial(jax.jit, static_argnames=("hidden_size", "head_size"))
def multihead_attention_forward(params, q, k, v, mask=None, *,
                                hidden_size=32, head_size=4):
    B, Lq, H = q.shape
    Lk = k.shape[1]
    hd = hidden_size // head_size

    # Weights stay untransposed (out_features, in_features); biases as (1, H)
    # rows so they broadcast against (L, H) tiles inside the kernel.
    args = [q, k, v]
    in_specs = [
        pl.BlockSpec((1, Lq, H), lambda b: (b, 0, 0)),
        pl.BlockSpec((1, Lk, H), lambda b: (b, 0, 0)),
        pl.BlockSpec((1, Lk, H), lambda b: (b, 0, 0)),
    ]
    for name in ["wq", "wk", "wv", "wo"]:
        args.append(params[f"{name}_w"])
        in_specs.append(pl.BlockSpec((H, H), lambda b: (0, 0)))
        args.append(params[f"{name}_b"].reshape(1, H))
        in_specs.append(pl.BlockSpec((1, H), lambda b: (0, 0)))

    has_mask = mask is not None
    if has_mask:
        m = jnp.broadcast_to(mask.astype(jnp.float32), (B, head_size, Lq, Lk))
        args.append(m)
        in_specs.append(pl.BlockSpec((1, head_size, Lq, Lk),
                                     lambda b: (b, 0, 0, 0)))

    kernel = functools.partial(_mha_fused_kernel, head_size=head_size,
                               head_dim=hd, has_mask=has_mask)

    final, attention_weights = pl.pallas_call(
        kernel,
        out_shape=(
            jax.ShapeDtypeStruct((B, Lq, hidden_size), q.dtype),
            jax.ShapeDtypeStruct((B, head_size, Lq, Lk), jnp.float32),
        ),
        grid_spec=pltpu.PrefetchScalarGridSpec(
            num_scalar_prefetch=0,
            grid=(B,),
            in_specs=in_specs,
            out_specs=[
                pl.BlockSpec((1, Lq, hidden_size), lambda b: (b, 0, 0)),
                pl.BlockSpec((1, head_size, Lq, Lk), lambda b: (b, 0, 0, 0)),
            ],
        ),
        compiler_params=pltpu.CompilerParams(
            dimension_semantics=("parallel",)),
    )(*args)
    return final, attention_weights


# --------------------------------- reference ---------------------------------

def _reference(params, q, k, v, hidden_size, head_size, mask=None):
    def lin(x, w, b):
        return jnp.einsum("blh,oh->blo", x, w) + b

    def split(x):
        B, L, _ = x.shape
        return x.reshape(B, L, head_size,
                         hidden_size // head_size).transpose(0, 2, 1, 3)

    qw = split(lin(q, params["wq_w"], params["wq_b"]))
    kw = split(lin(k, params["wk_w"], params["wk_b"]))
    vw = split(lin(v, params["wv_w"], params["wv_b"]))
    d = kw.shape[-1]
    scores = jnp.einsum("bhqd,bhkd->bhqk", qw, kw) / jnp.sqrt(jnp.float32(d))
    if mask is not None:
        scores = scores + mask.astype(jnp.float32) * (-1e30)
    w = jax.nn.softmax(scores, axis=-1)
    o = jnp.einsum("bhqk,bhkd->bhqd", w, vw)
    B, _, Lq, _ = o.shape
    o = o.transpose(0, 2, 1, 3).reshape(B, Lq, hidden_size)
    final = lin(o, params["wo_w"], params["wo_b"])
    return final, w


# ------------------------------------ main -----------------------------------

if __name__ == "__main__":
    hidden_size = 32
    head_size = 4
    batch = 2
    seq = 8

    key = jax.random.PRNGKey(0)
    kp, kq, kk, kv = jax.random.split(key, 4)
    params = init_params(kp, hidden_size)
    q = jax.random.normal(kq, (batch, seq, hidden_size), jnp.float32)
    k = jax.random.normal(kk, (batch, seq, hidden_size), jnp.float32)
    v = jax.random.normal(kv, (batch, seq, hidden_size), jnp.float32)

    # ---- no-mask path (module default) ----
    final, attn_w = multihead_attention_forward(
        params, q, k, v, None, hidden_size=hidden_size, head_size=head_size)
    final = jax.block_until_ready(final)
    attn_w = jax.block_until_ready(attn_w)

    ref_final, ref_w = _reference(params, q, k, v, hidden_size, head_size)
    np.testing.assert_allclose(np.asarray(final), np.asarray(ref_final),
                               atol=2e-5, rtol=2e-5)
    np.testing.assert_allclose(np.asarray(attn_w), np.asarray(ref_w),
                               atol=2e-5, rtol=2e-5)
    assert final.shape == (batch, seq, hidden_size)
    assert attn_w.shape == (batch, head_size, seq, seq)

    # ---- masked path (mask * -1e30 added to scores, per the module spec) ----
    causal = jnp.triu(jnp.ones((seq, seq), jnp.float32), k=1)  # 1 = disallowed
    mask = causal.reshape(1, 1, seq, seq)
    final_m, attn_w_m = multihead_attention_forward(
        params, q, k, v, mask, hidden_size=hidden_size, head_size=head_size)
    final_m = jax.block_until_ready(final_m)
    attn_w_m = jax.block_until_ready(attn_w_m)

    ref_final_m, ref_w_m = _reference(params, q, k, v, hidden_size, head_size,
                                      mask=mask)
    np.testing.assert_allclose(np.asarray(final_m), np.asarray(ref_final_m),
                               atol=2e-5, rtol=2e-5)
    np.testing.assert_allclose(np.asarray(attn_w_m), np.asarray(ref_w_m),
                               atol=2e-5, rtol=2e-5)

    print("KERNEL_OK")
</pallas_src>

<mosaic_0001>
module attributes {stable_mosaic.version = 11 : i64} {
  func.func @_mha_fused_kernel(%arg0: i32, %arg1: memref<1x8x32xf32, #tpu.memory_space<vmem>>, %arg2: memref<1x8x32xf32, #tpu.memory_space<vmem>>, %arg3: memref<1x8x32xf32, #tpu.memory_space<vmem>>, %arg4: memref<32x32xf32, #tpu.memory_space<vmem>>, %arg5: memref<1x32xf32, #tpu.memory_space<vmem>>, %arg6: memref<32x32xf32, #tpu.memory_space<vmem>>, %arg7: memref<1x32xf32, #tpu.memory_space<vmem>>, %arg8: memref<32x32xf32, #tpu.memory_space<vmem>>, %arg9: memref<1x32xf32, #tpu.memory_space<vmem>>, %arg10: memref<32x32xf32, #tpu.memory_space<vmem>>, %arg11: memref<1x32xf32, #tpu.memory_space<vmem>>, %arg12: memref<1x8x32xf32, #tpu.memory_space<vmem>>, %arg13: memref<1x4x8x8xf32, #tpu.memory_space<vmem>>) attributes {dimension_semantics = [#tpu.dimension_semantics<parallel>], iteration_bounds = array<i64: 2>, scalar_prefetch = 0 : i64, scratch_operands = 0 : i64, tpu.core_type = #tpu.core_type<tc>, window_params = [{transform_indices = @transform_0, window_bounds = array<i64: 1, 8, 32>}, {transform_indices = @transform_1, window_bounds = array<i64: 1, 8, 32>}, {transform_indices = @transform_2, window_bounds = array<i64: 1, 8, 32>}, {pipeline_mode = #tpu.pipeline_mode<synchronous>, transform_indices = @transform_3, window_bounds = array<i64: 32, 32>}, {pipeline_mode = #tpu.pipeline_mode<synchronous>, transform_indices = @transform_4, window_bounds = array<i64: 1, 32>}, {pipeline_mode = #tpu.pipeline_mode<synchronous>, transform_indices = @transform_5, window_bounds = array<i64: 32, 32>}, {pipeline_mode = #tpu.pipeline_mode<synchronous>, transform_indices = @transform_6, window_bounds = array<i64: 1, 32>}, {pipeline_mode = #tpu.pipeline_mode<synchronous>, transform_indices = @transform_7, window_bounds = array<i64: 32, 32>}, {pipeline_mode = #tpu.pipeline_mode<synchronous>, transform_indices = @transform_8, window_bounds = array<i64: 1, 32>}, {pipeline_mode = #tpu.pipeline_mode<synchronous>, transform_indices = @transform_9, window_bounds = array<i64: 32, 32>}, {pipeline_mode = #tpu.pipeline_mode<synchronous>, transform_indices = @transform_10, window_bounds = array<i64: 1, 32>}, {transform_indices = @transform_11, window_bounds = array<i64: 1, 8, 32>}, {transform_indices = @transform_12, window_bounds = array<i64: 1, 4, 8, 8>}]} {
    %c0 = arith.constant 0 : index
    %c0_0 = arith.constant 0 : index
    %c0_1 = arith.constant 0 : index
    %0 = vector.load %arg1[%c0, %c0_0, %c0_1] : memref<1x8x32xf32, #tpu.memory_space<vmem>>, vector<1x8x32xf32>
    %1 = vector.shape_cast %0 : vector<1x8x32xf32> to vector<8x32xf32>
    %c0_2 = arith.constant 0 : index
    %c0_3 = arith.constant 0 : index
    %c0_4 = arith.constant 0 : index
    %2 = vector.load %arg2[%c0_2, %c0_3, %c0_4] : memref<1x8x32xf32, #tpu.memory_space<vmem>>, vector<1x8x32xf32>
    %3 = vector.shape_cast %2 : vector<1x8x32xf32> to vector<8x32xf32>
    %c0_5 = arith.constant 0 : index
    %c0_6 = arith.constant 0 : index
    %c0_7 = arith.constant 0 : index
    %4 = vector.load %arg3[%c0_5, %c0_6, %c0_7] : memref<1x8x32xf32, #tpu.memory_space<vmem>>, vector<1x8x32xf32>
    %5 = vector.shape_cast %4 : vector<1x8x32xf32> to vector<8x32xf32>
    %c0_8 = arith.constant 0 : index
    %c0_9 = arith.constant 0 : index
    %6 = vector.load %arg4[%c0_8, %c0_9] : memref<32x32xf32, #tpu.memory_space<vmem>>, vector<32x32xf32>
    %cst = arith.constant dense<0.000000e+00> : vector<8x32xf32>
    %7 = tpu.matmul %1, %6, %cst {dimension_numbers = #tpu.dot_dimension_numbers<[1], [1], [0], [0], [0, 0, 1, 0], [], []>} : vector<8x32xf32>, vector<32x32xf32>, vector<8x32xf32> -> vector<8x32xf32>
    %c0_10 = arith.constant 0 : index
    %c0_11 = arith.constant 0 : index
    %8 = vector.load %arg5[%c0_10, %c0_11] : memref<1x32xf32, #tpu.memory_space<vmem>>, vector<1x32xf32>
    %9 = vector.broadcast %8 : vector<1x32xf32> to vector<8x32xf32>
    %10 = arith.addf %7, %9 : vector<8x32xf32>
    %c0_12 = arith.constant 0 : index
    %c0_13 = arith.constant 0 : index
    %11 = vector.load %arg6[%c0_12, %c0_13] : memref<32x32xf32, #tpu.memory_space<vmem>>, vector<32x32xf32>
    %cst_14 = arith.constant dense<0.000000e+00> : vector<8x32xf32>
    %12 = tpu.matmul %3, %11, %cst_14 {dimension_numbers = #tpu.dot_dimension_numbers<[1], [1], [0], [0], [0, 0, 1, 0], [], []>} : vector<8x32xf32>, vector<32x32xf32>, vector<8x32xf32> -> vector<8x32xf32>
    %c0_15 = arith.constant 0 : index
    %c0_16 = arith.constant 0 : index
    %13 = vector.load %arg7[%c0_15, %c0_16] : memref<1x32xf32, #tpu.memory_space<vmem>>, vector<1x32xf32>
    %14 = vector.broadcast %13 : vector<1x32xf32> to vector<8x32xf32>
    %15 = arith.addf %12, %14 : vector<8x32xf32>
    %c0_17 = arith.constant 0 : index
    %c0_18 = arith.constant 0 : index
    %16 = vector.load %arg8[%c0_17, %c0_18] : memref<32x32xf32, #tpu.memory_space<vmem>>, vector<32x32xf32>
    %cst_19 = arith.constant dense<0.000000e+00> : vector<8x32xf32>
    %17 = tpu.matmul %5, %16, %cst_19 {dimension_numbers = #tpu.dot_dimension_numbers<[1], [1], [0], [0], [0, 0, 1, 0], [], []>} : vector<8x32xf32>, vector<32x32xf32>, vector<8x32xf32> -> vector<8x32xf32>
    %c0_20 = arith.constant 0 : index
    %c0_21 = arith.constant 0 : index
    %18 = vector.load %arg9[%c0_20, %c0_21] : memref<1x32xf32, #tpu.memory_space<vmem>>, vector<1x32xf32>
    %19 = vector.broadcast %18 : vector<1x32xf32> to vector<8x32xf32>
    %20 = arith.addf %17, %19 : vector<8x32xf32>
    %cst_22 = arith.constant 0.353553385 : f32
    %21 = vector.broadcast %cst_22 : f32 to vector<8x32xf32>
    %22 = arith.mulf %10, %21 : vector<8x32xf32>
    %23 = vector.extract_strided_slice %22 {offsets = [0, 0], sizes = [8, 8], strides = [1, 1]} : vector<8x32xf32> to vector<8x8xf32>
    %24 = vector.extract_strided_slice %15 {offsets = [0, 0], sizes = [8, 8], strides = [1, 1]} : vector<8x32xf32> to vector<8x8xf32>
    %25 = vector.extract_strided_slice %20 {offsets = [0, 0], sizes = [8, 8], strides = [1, 1]} : vector<8x32xf32> to vector<8x8xf32>
    %cst_23 = arith.constant dense<0.000000e+00> : vector<8x8xf32>
    %26 = tpu.matmul %23, %24, %cst_23 {dimension_numbers = #tpu.dot_dimension_numbers<[1], [1], [0], [0], [0, 0, 1, 0], [], []>} : vector<8x8xf32>, vector<8x8xf32>, vector<8x8xf32> -> vector<8x8xf32>
    %cst_24 = arith.constant dense<0xFF800000> : vector<8xf32>
    %27 = vector.multi_reduction <maximumf>, %26, %cst_24 [1] : vector<8x8xf32> to vector<8xf32>
    %28 = vector.shape_cast %27 : vector<8xf32> to vector<8x1xf32>
    %29 = vector.broadcast %28 : vector<8x1xf32> to vector<8x8xf32>
    %30 = arith.subf %26, %29 : vector<8x8xf32>
    %31 = math.exp %30 : vector<8x8xf32>
    %cst_25 = arith.constant dense<0.000000e+00> : vector<8xf32>
    %32 = vector.multi_reduction <add>, %31, %cst_25 [1] : vector<8x8xf32> to vector<8xf32>
    %33 = vector.shape_cast %32 : vector<8xf32> to vector<8x1xf32>
    %34 = tpu.reciprocal %33 : vector<8x1xf32> -> vector<8x1xf32>
    %35 = vector.broadcast %34 : vector<8x1xf32> to vector<8x8xf32>
    %36 = arith.mulf %31, %35 : vector<8x8xf32>
    %cst_26 = arith.constant dense<0.000000e+00> : vector<8x8xf32>
    %37 = tpu.matmul %36, %25, %cst_26 {dimension_numbers = #tpu.dot_dimension_numbers<[1], [0], [0], [1], [0, 0, 1, 1], [], []>} : vector<8x8xf32>, vector<8x8xf32>, vector<8x8xf32> -> vector<8x8xf32>
    %38 = vector.extract_strided_slice %22 {offsets = [0, 8], sizes = [8, 8], strides = [1, 1]} : vector<8x32xf32> to vector<8x8xf32>
    %39 = vector.extract_strided_slice %15 {offsets = [0, 8], sizes = [8, 8], strides = [1, 1]} : vector<8x32xf32> to vector<8x8xf32>
    %40 = vector.extract_strided_slice %20 {offsets = [0, 8], sizes = [8, 8], strides = [1, 1]} : vector<8x32xf32> to vector<8x8xf32>
    %cst_27 = arith.constant dense<0.000000e+00> : vector<8x8xf32>
    %41 = tpu.matmul %38, %39, %cst_27 {dimension_numbers = #tpu.dot_dimension_numbers<[1], [1], [0], [0], [0, 0, 1, 0], [], []>} : vector<8x8xf32>, vector<8x8xf32>, vector<8x8xf32> -> vector<8x8xf32>
    %cst_28 = arith.constant dense<0xFF800000> : vector<8xf32>
    %42 = vector.multi_reduction <maximumf>, %41, %cst_28 [1] : vector<8x8xf32> to vector<8xf32>
    %43 = vector.shape_cast %42 : vector<8xf32> to vector<8x1xf32>
    %44 = vector.broadcast %43 : vector<8x1xf32> to vector<8x8xf32>
    %45 = arith.subf %41, %44 : vector<8x8xf32>
    %46 = math.exp %45 : vector<8x8xf32>
    %cst_29 = arith.constant dense<0.000000e+00> : vector<8xf32>
    %47 = vector.multi_reduction <add>, %46, %cst_29 [1] : vector<8x8xf32> to vector<8xf32>
    %48 = vector.shape_cast %47 : vector<8xf32> to vector<8x1xf32>
    %49 = tpu.reciprocal %48 : vector<8x1xf32> -> vector<8x1xf32>
    %50 = vector.broadcast %49 : vector<8x1xf32> to vector<8x8xf32>
    %51 = arith.mulf %46, %50 : vector<8x8xf32>
    %cst_30 = arith.constant dense<0.000000e+00> : vector<8x8xf32>
    %52 = tpu.matmul %51, %40, %cst_30 {dimension_numbers = #tpu.dot_dimension_numbers<[1], [0], [0], [1], [0, 0, 1, 1], [], []>} : vector<8x8xf32>, vector<8x8xf32>, vector<8x8xf32> -> vector<8x8xf32>
    %53 = vector.extract_strided_slice %22 {offsets = [0, 16], sizes = [8, 8], strides = [1, 1]} : vector<8x32xf32> to vector<8x8xf32>
    %54 = vector.extract_strided_slice %15 {offsets = [0, 16], sizes = [8, 8], strides = [1, 1]} : vector<8x32xf32> to vector<8x8xf32>
    %55 = vector.extract_strided_slice %20 {offsets = [0, 16], sizes = [8, 8], strides = [1, 1]} : vector<8x32xf32> to vector<8x8xf32>
    %cst_31 = arith.constant dense<0.000000e+00> : vector<8x8xf32>
    %56 = tpu.matmul %53, %54, %cst_31 {dimension_numbers = #tpu.dot_dimension_numbers<[1], [1], [0], [0], [0, 0, 1, 0], [], []>} : vector<8x8xf32>, vector<8x8xf32>, vector<8x8xf32> -> vector<8x8xf32>
    %cst_32 = arith.constant dense<0xFF800000> : vector<8xf32>
    %57 = vector.multi_reduction <maximumf>, %56, %cst_32 [1] : vector<8x8xf32> to vector<8xf32>
    %58 = vector.shape_cast %57 : vector<8xf32> to vector<8x1xf32>
    %59 = vector.broadcast %58 : vector<8x1xf32> to vector<8x8xf32>
    %60 = arith.subf %56, %59 : vector<8x8xf32>
    %61 = math.exp %60 : vector<8x8xf32>
    %cst_33 = arith.constant dense<0.000000e+00> : vector<8xf32>
    %62 = vector.multi_reduction <add>, %61, %cst_33 [1] : vector<8x8xf32> to vector<8xf32>
    %63 = vector.shape_cast %62 : vector<8xf32> to vector<8x1xf32>
    %64 = tpu.reciprocal %63 : vector<8x1xf32> -> vector<8x1xf32>
    %65 = vector.broadcast %64 : vector<8x1xf32> to vector<8x8xf32>
    %66 = arith.mulf %61, %65 : vector<8x8xf32>
    %cst_34 = arith.constant dense<0.000000e+00> : vector<8x8xf32>
    %67 = tpu.matmul %66, %55, %cst_34 {dimension_numbers = #tpu.dot_dimension_numbers<[1], [0], [0], [1], [0, 0, 1, 1], [], []>} : vector<8x8xf32>, vector<8x8xf32>, vector<8x8xf32> -> vector<8x8xf32>
    %68 = vector.extract_strided_slice %22 {offsets = [0, 24], sizes = [8, 8], strides = [1, 1]} : vector<8x32xf32> to vector<8x8xf32>
    %69 = vector.extract_strided_slice %15 {offsets = [0, 24], sizes = [8, 8], strides = [1, 1]} : vector<8x32xf32> to vector<8x8xf32>
    %70 = vector.extract_strided_slice %20 {offsets = [0, 24], sizes = [8, 8], strides = [1, 1]} : vector<8x32xf32> to vector<8x8xf32>
    %cst_35 = arith.constant dense<0.000000e+00> : vector<8x8xf32>
    %71 = tpu.matmul %68, %69, %cst_35 {dimension_numbers = #tpu.dot_dimension_numbers<[1], [1], [0], [0], [0, 0, 1, 0], [], []>} : vector<8x8xf32>, vector<8x8xf32>, vector<8x8xf32> -> vector<8x8xf32>
    %cst_36 = arith.constant dense<0xFF800000> : vector<8xf32>
    %72 = vector.multi_reduction <maximumf>, %71, %cst_36 [1] : vector<8x8xf32> to vector<8xf32>
    %73 = vector.shape_cast %72 : vector<8xf32> to vector<8x1xf32>
    %74 = vector.broadcast %73 : vector<8x1xf32> to vector<8x8xf32>
    %75 = arith.subf %71, %74 : vector<8x8xf32>
    %76 = math.exp %75 : vector<8x8xf32>
    %cst_37 = arith.constant dense<0.000000e+00> : vector<8xf32>
    %77 = vector.multi_reduction <add>, %76, %cst_37 [1] : vector<8x8xf32> to vector<8xf32>
    %78 = vector.shape_cast %77 : vector<8xf32> to vector<8x1xf32>
    %79 = tpu.reciprocal %78 : vector<8x1xf32> -> vector<8x1xf32>
    %80 = vector.broadcast %79 : vector<8x1xf32> to vector<8x8xf32>
    %81 = arith.mulf %76, %80 : vector<8x8xf32>
    %cst_38 = arith.constant dense<0.000000e+00> : vector<8x8xf32>
    %82 = tpu.matmul %81, %70, %cst_38 {dimension_numbers = #tpu.dot_dimension_numbers<[1], [0], [0], [1], [0, 0, 1, 1], [], []>} : vector<8x8xf32>, vector<8x8xf32>, vector<8x8xf32> -> vector<8x8xf32>
    %83 = vector.shape_cast %36 : vector<8x8xf32> to vector<1x8x8xf32>
    %84 = vector.shape_cast %51 : vector<8x8xf32> to vector<1x8x8xf32>
    %85 = vector.shape_cast %66 : vector<8x8xf32> to vector<1x8x8xf32>
    %86 = vector.shape_cast %81 : vector<8x8xf32> to vector<1x8x8xf32>
    %87 = tpu.concatenate %83, %84, %85, %86 in 0 : vector<1x8x8xf32>, vector<1x8x8xf32>, vector<1x8x8xf32>, vector<1x8x8xf32> -> vector<4x8x8xf32>
    %c0_39 = arith.constant 0 : index
    %c0_40 = arith.constant 0 : index
    %c0_41 = arith.constant 0 : index
    %c0_42 = arith.constant 0 : index
    %88 = vector.load %arg13[%c0_39, %c0_40, %c0_41, %c0_42] : memref<1x4x8x8xf32, #tpu.memory_space<vmem>>, vector<1x4x8x8xf32>
    %89 = vector.shape_cast %88 : vector<1x4x8x8xf32> to vector<4x8x8xf32>
    %90 = vector.shape_cast %87 : vector<4x8x8xf32> to vector<1x4x8x8xf32>
    tpu.vector_store %arg13[%c0_39, %c0_40, %c0_41, %c0_42], %90 {strides = array<i32>} : memref<1x4x8x8xf32, #tpu.memory_space<vmem>>, vector<1x4x8x8xf32>,
    %91 = tpu.concatenate %37, %52, %67, %82 in 1 : vector<8x8xf32>, vector<8x8xf32>, vector<8x8xf32>, vector<8x8xf32> -> vector<8x32xf32>
    %c0_43 = arith.constant 0 : index
    %c0_44 = arith.constant 0 : index
    %92 = vector.load %arg10[%c0_43, %c0_44] : memref<32x32xf32, #tpu.memory_space<vmem>>, vector<32x32xf32>
    %cst_45 = arith.constant dense<0.000000e+00> : vector<8x32xf32>
    %93 = tpu.matmul %91, %92, %cst_45 {dimension_numbers = #tpu.dot_dimension_numbers<[1], [1], [0], [0], [0, 0, 1, 0], [], []>} : vector<8x32xf32>, vector<32x32xf32>, vector<8x32xf32> -> vector<8x32xf32>
    %c0_46 = arith.constant 0 : index
    %c0_47 = arith.constant 0 : index
    %94 = vector.load %arg11[%c0_46, %c0_47] : memref<1x32xf32, #tpu.memory_space<vmem>>, vector<1x32xf32>
    %95 = vector.broadcast %94 : vector<1x32xf32> to vector<8x32xf32>
    %96 = arith.addf %93, %95 : vector<8x32xf32>
    %c0_48 = arith.constant 0 : index
    %c0_49 = arith.constant 0 : index
    %c0_50 = arith.constant 0 : index
    %97 = vector.load %arg12[%c0_48, %c0_49, %c0_50] : memref<1x8x32xf32, #tpu.memory_space<vmem>>, vector<1x8x32xf32>
    %98 = vector.shape_cast %97 : vector<1x8x32xf32> to vector<8x32xf32>
    %99 = vector.shape_cast %96 : vector<8x32xf32> to vector<1x8x32xf32>
    tpu.vector_store %arg12[%c0_48, %c0_49, %c0_50], %99 {strides = array<i32>} : memref<1x8x32xf32, #tpu.memory_space<vmem>>, vector<1x8x32xf32>,
    return
  }
  func.func @transform_0(%arg0: i32) -> (i32, i32, i32) {
    %c0_i32 = arith.constant 0 : i32
    %c0_i32_0 = arith.constant 0 : i32
    %c0_i32_1 = arith.constant 0 : i32
    return %arg0, %c0_i32, %c0_i32_0 : i32, i32, i32
  }
  func.func @transform_1(%arg0: i32) -> (i32, i32, i32) {
    %c0_i32 = arith.constant 0 : i32
    %c0_i32_0 = arith.constant 0 : i32
    %c0_i32_1 = arith.constant 0 : i32
    return %arg0, %c0_i32, %c0_i32_0 : i32, i32, i32
  }
  func.func @transform_2(%arg0: i32) -> (i32, i32, i32) {
    %c0_i32 = arith.constant 0 : i32
    %c0_i32_0 = arith.constant 0 : i32
    %c0_i32_1 = arith.constant 0 : i32
    return %arg0, %c0_i32, %c0_i32_0 : i32, i32, i32
  }
  func.func @transform_3(%arg0: i32) -> (i32, i32) {
    %c0_i32 = arith.constant 0 : i32
    %c0_i32_0 = arith.constant 0 : i32
    %c0_i32_1 = arith.constant 0 : i32
    return %c0_i32, %c0_i32_0 : i32, i32
  }
  func.func @transform_4(%arg0: i32) -> (i32, i32) {
    %c0_i32 = arith.constant 0 : i32
    %c0_i32_0 = arith.constant 0 : i32
    %c0_i32_1 = arith.constant 0 : i32
    return %c0_i32, %c0_i32_0 : i32, i32
  }
  func.func @transform_5(%arg0: i32) -> (i32, i32) {
    %c0_i32 = arith.constant 0 : i32
    %c0_i32_0 = arith.constant 0 : i32
    %c0_i32_1 = arith.constant 0 : i32
    return %c0_i32, %c0_i32_0 : i32, i32
  }
  func.func @transform_6(%arg0: i32) -> (i32, i32) {
    %c0_i32 = arith.constant 0 : i32
    %c0_i32_0 = arith.constant 0 : i32
    %c0_i32_1 = arith.constant 0 : i32
    return %c0_i32, %c0_i32_0 : i32, i32
  }
  func.func @transform_7(%arg0: i32) -> (i32, i32) {
    %c0_i32 = arith.constant 0 : i32
    %c0_i32_0 = arith.constant 0 : i32
    %c0_i32_1 = arith.constant 0 : i32
    return %c0_i32, %c0_i32_0 : i32, i32
  }
  func.func @transform_8(%arg0: i32) -> (i32, i32) {
    %c0_i32 = arith.constant 0 : i32
    %c0_i32_0 = arith.constant 0 : i32
    %c0_i32_1 = arith.constant 0 : i32
    return %c0_i32, %c0_i32_0 : i32, i32
  }
  func.func @transform_9(%arg0: i32) -> (i32, i32) {
    %c0_i32 = arith.constant 0 : i32
    %c0_i32_0 = arith.constant 0 : i32
    %c0_i32_1 = arith.constant 0 : i32
    return %c0_i32, %c0_i32_0 : i32, i32
  }
  func.func @transform_10(%arg0: i32) -> (i32, i32) {
    %c0_i32 = arith.constant 0 : i32
    %c0_i32_0 = arith.constant 0 : i32
    %c0_i32_1 = arith.constant 0 : i32
    return %c0_i32, %c0_i32_0 : i32, i32
  }
  func.func @transform_11(%arg0: i32) -> (i32, i32, i32) {
    %c0_i32 = arith.constant 0 : i32
    %c0_i32_0 = arith.constant 0 : i32
    %c0_i32_1 = arith.constant 0 : i32
    return %arg0, %c0_i32, %c0_i32_0 : i32, i32, i32
  }
  func.func @transform_12(%arg0: i32) -> (i32, i32, i32, i32) {
    %c0_i32 = arith.constant 0 : i32
    %c0_i32_0 = arith.constant 0 : i32
    %c0_i32_1 = arith.constant 0 : i32
    %c0_i32_2 = arith.constant 0 : i32
    return %arg0, %c0_i32, %c0_i32_0, %c0_i32_1 : i32, i32, i32, i32
  }
}

</mosaic_0001>

<llo_original>
// kernel: multihead_attention_forward.1
$region0: #{multihead_attention_forward.1}
  #allocation0 [shape = 'u32[]', space=smem, size = 0x4, offset = 0x4, fixed_abs, tag = 'smem constant byte address 0x4 - core index']
  #allocation1 [shape = 'u32[144,128]{1,0:T(1,128)}', space=vmem, size = 0x12000, scoped, tag = 'internal scratch']
  %s0 = inlined_call_operand.hbm [shape: f32[2,8,32], index: 0, kind: input, shape index: {}]
  %s1 = inlined_call_operand.vmem [shape: f32[2,8,32], index: 1, kind: input, shape index: {}]
  %s2 = inlined_call_operand.hbm [shape: f32[2,8,32], index: 2, kind: input, shape index: {}]
  %s3 = inlined_call_operand.vmem [shape: f32[32,32], index: 3, kind: input, shape index: {}]
  %s4 = inlined_call_operand.vmem [shape: f32[1,32], index: 4, kind: input, shape index: {}]
  %s5 = inlined_call_operand.hbm [shape: f32[32,32], index: 5, kind: input, shape index: {}]
  %s6 = inlined_call_operand.hbm [shape: f32[1,32], index: 6, kind: input, shape index: {}]
  %s7 = inlined_call_operand.hbm [shape: f32[32,32], index: 7, kind: input, shape index: {}]
  %s8 = inlined_call_operand.hbm [shape: f32[1,32], index: 8, kind: input, shape index: {}]
  %s9 = inlined_call_operand.hbm [shape: f32[32,32], index: 9, kind: input, shape index: {}]
  %s10 = inlined_call_operand.hbm [shape: f32[1,32], index: 10, kind: input, shape index: {}]
  %s11 = inlined_call_operand.hbm [shape: f32[2,8,32], index: 11, kind: output, shape index: {0}]
  %s12 = inlined_call_operand.hbm [shape: f32[2,4,8,8], index: 12, kind: output, shape index: {1}]
  %13 = xla_tuple %s11, %s12
  %s14 = sld [smem:[#allocation0]]
  $region117: #{multihead_attention_forward.1} parent=0
    _
  %s16 = ssub.s32 1, %s14
  %s17 = scalar_select 0, %s16, %s14
  $region1: #{multihead_attention_forward.1} parent=0
    #allocation2 [shape = 'u8[8192]{0}', space=vmem, size = 0x2000, scoped, tag = 'input window, operand 0']
    #allocation3 [shape = 's32[2]{0}', space=sflag, size = 0x8, scoped, tag = 'scoped memory for multihead_attention_forward.1']
    #allocation4 [shape = 's32[2]{0}', space=sflag, size = 0x8, scoped, tag = 'scoped memory for multihead_attention_forward.1']
    #allocation5 [shape = 'u8[8192]{0}', space=vmem, size = 0x2000, scoped, tag = 'input window, operand 2']
    #allocation6 [shape = 's32[2]{0}', space=sflag, size = 0x8, scoped, tag = 'scoped memory for multihead_attention_forward.1']
    #allocation7 [shape = 'u8[16384]{0}', space=vmem, size = 0x4000, scoped, tag = 'input window, operand 5, single buffered']
    #allocation8 [shape = 'u8[512]{0}', space=vmem, size = 0x400, scoped, tag = 'input window, operand 6, single buffered']
    #allocation9 [shape = 's32[1]{0}', space=sflag, size = 0x4, scoped, tag = 'scoped memory for multihead_attention_forward.1']
    #allocation10 [shape = 'u8[16384]{0}', space=vmem, size = 0x4000, scoped, tag = 'input window, operand 7, single buffered']
    #allocation11 [shape = 'u8[512]{0}', space=vmem, size = 0x400, scoped, tag = 'input window, operand 8, single buffered']
    #allocation12 [shape = 's32[1]{0}', space=sflag, size = 0x4, scoped, tag = 'scoped memory for multihead_attention_forward.1']
    #allocation13 [shape = 'u8[16384]{0}', space=vmem, size = 0x4000, scoped, tag = 'input window, operand 9, single buffered']
    #allocation14 [shape = 'u8[512]{0}', space=vmem, size = 0x400, scoped, tag = 'input window, operand 10, single buffered']
    #allocation15 [shape = 's32[1]{0}', space=sflag, size = 0x4, scoped, tag = 'scoped memory for multihead_attention_forward.1']
    #allocation16 [shape = 'u8[8192]{0}', space=vmem, size = 0x2000, scoped, tag = 'output window, operand 0']
    #allocation17 [shape = 'u8[32768]{0}', space=vmem, size = 0x8000, scoped, tag = 'output window, operand 1']
    #allocation18 [shape = 's32[2]{0}', space=sflag, size = 0x8, scoped, tag = 'scoped memory for multihead_attention_forward.1']
    %18 = vsyncpa [#allocation3], 0
    %s19 = scalar_lea.sflag [#allocation3], 1
    %20 = vsyncpa %s19, 0
    %21 = vsyncpa [#allocation6], 0
    %s22 = scalar_lea.sflag [#allocation6], 1
    %23 = vsyncpa %s22, 0
    %24 = vsyncpa [#allocation9], 0
    %25 = vsyncpa [#allocation12], 0
    %26 = vsyncpa [#allocation15], 0
    %27 = vsyncpa [#allocation4], 0
    %s28 = scalar_lea.sflag [#allocation4], 1
    %29 = vsyncpa %s28, 0
    %30 = vsyncpa [#allocation18], 0
    %s31 = scalar_lea.sflag [#allocation18], 1
    %32 = vsyncpa %s31, 0
    loop: start=0, step=1, limit=4
    $region2: #{multihead_attention_forward.1} parent=1 // loop_pre_header
      _
    $region3: #{multihead_attention_forward.1} parent=1 // loop_header
      %s34 = sphi 0, %s38
      %p35 = scmp.ge.s32.totalorder %s34, 4
      %s44 = sphi 0, %s46
      %s47 = sphi 0, %s44
      %s48 = sphi 0, %s47
      %s64 = sphi 0, %s48
      %s70 = sphi 0, %s72
      %s73 = sphi 0, %s70
      %s74 = sphi 0, %s73
      %s90 = sphi 0, %s74
      %s96 = sphi 0, %s98
      %s99 = sphi 0, %s96
      %s100 = sphi 0, %s99
      %s116 = sphi 0, %s100
      %s120 = sphi 0, %s120
      %s122 = sphi 0, %s120
      %s123 = sphi 0, %s122
      %s137 = sphi 0, %s123
      %s141 = sphi 0, %s141
      %s143 = sphi 0, %s141
      %s144 = sphi 0, %s143
      %s158 = sphi 0, %s144
      %s162 = sphi 0, %s162
      %s164 = sphi 0, %s162
      %s165 = sphi 0, %s164
      %s179 = sphi 0, %s165
      %s183 = sphi 0, %s183
      %s185 = sphi 0, %s183
      %s186 = sphi 0, %s185
      %s200 = sphi 0, %s186
      %s204 = sphi 0, %s204
      %s206 = sphi 0, %s204
      %s207 = sphi 0, %s206
      %s221 = sphi 0, %s207
      %s225 = sphi 0, %s225
      %s227 = sphi 0, %s225
      %s228 = sphi 0, %s227
      %s242 = sphi 0, %s228
      %s246 = sphi 0, %s246
      %s248 = sphi 0, %s246
      %s249 = sphi 0, %s248
      %s263 = sphi 0, %s249
      %s267 = sphi 0, %s267
      %s269 = sphi 0, %s267
      %s270 = sphi 0, %s269
      %s284 = sphi 0, %s270
      %s290 = sphi 0, %s292
      %s293 = sphi 0, %s290
      %s294 = sphi 0, %s293
      %s310 = sphi 0, %s294
      %s316 = sphi 0, %s318
      %s319 = sphi 0, %s316
      %s320 = sphi 0, %s319
      %s336 = sphi 0, %s320
    $region4: #{multihead_attention_forward.1} parent=1 // loop_header_branch
      %37 = sbr.rel (%p35) target = $region8
    $region5: #{multihead_attention_forward.1} parent=1 // loop_body
      %s39 = ssub.s32 %s34, 1
      %s40 = ssub.s32 %s34, 2
      %s41 = sadd.s32 %s34, 1
      %s42 = ssub.s32 %s34, %s41
      %p43 = scmp.eq.s32.totalorder %s42, 0
      %s45 = sadd.s32 %s44, 1
      %s46 = scalar_select %p43, %s44, %s45
      %p49 = pneg %p43
      %p50 = scmp.eq.s32.totalorder %s34, 1
      %p51 = por %p49, %p50
      %p52 = scmp.ne.s32.totalorder %s44, %s47
      %p53 = scmp.eq.s32.totalorder %s34, 0
      %p54 = por %p52, %p53
      %p55 = scmp.ne.s32.totalorder %s44, %s47
      %p56 = scmp.eq.s32.totalorder %s39, 1
      %p57 = por %p55, %p56
      %p58 = scmp.ne.s32.totalorder %s47, %s48
      %p59 = scmp.eq.s32.totalorder %s39, 0
      %p60 = por %p58, %p59
      %p61 = scmp.ne.s32.totalorder %s47, %s48
      %p62 = scmp.eq.s32.totalorder %s40, 1
      %p63 = por %p61, %p62
      %p65 = scmp.ne.s32.totalorder %s48, %s64
      %p66 = scmp.eq.s32.totalorder %s40, 0
      %p67 = por %p65, %p66
      %s68 = ssub.s32 %s34, %s41
      %p69 = scmp.eq.s32.totalorder %s68, 0
      %s71 = sadd.s32 %s70, 1
      %s72 = scalar_select %p69, %s70, %s71
      %p75 = pneg %p69
      %p76 = scmp.eq.s32.totalorder %s34, 1
      %p77 = por %p75, %p76
      %p78 = scmp.ne.s32.totalorder %s70, %s73
      %p79 = scmp.eq.s32.totalorder %s34, 0
      %p80 = por %p78, %p79
      %p81 = scmp.ne.s32.totalorder %s70, %s73
      %p82 = scmp.eq.s32.totalorder %s39, 1
      %p83 = por %p81, %p82
      %p84 = scmp.ne.s32.totalorder %s73, %s74
      %p85 = scmp.eq.s32.totalorder %s39, 0
      %p86 = por %p84, %p85
      %p87 = scmp.ne.s32.totalorder %s73, %s74
      %p88 = scmp.eq.s32.totalorder %s40, 1
      %p89 = por %p87, %p88
      %p91 = scmp.ne.s32.totalorder %s74, %s90
      %p92 = scmp.eq.s32.totalorder %s40, 0
      %p93 = por %p91, %p92
      %s94 = ssub.s32 %s34, %s41
      %p95 = scmp.eq.s32.totalorder %s94, 0
      %s97 = sadd.s32 %s96, 1
      %s98 = scalar_select %p95, %s96, %s97
      %p101 = pneg %p95
      %p102 = scmp.eq.s32.totalorder %s34, 1
      %p103 = por %p101, %p102
      %p104 = scmp.ne.s32.totalorder %s96, %s99
      %p105 = scmp.eq.s32.totalorder %s34, 0
      %p106 = por %p104, %p105
      %p107 = scmp.ne.s32.totalorder %s96, %s99
      %p108 = scmp.eq.s32.totalorder %s39, 1
      %p109 = por %p107, %p108
      %p110 = scmp.ne.s32.totalorder %s99, %s100
      %p111 = scmp.eq.s32.totalorder %s39, 0
      %p112 = por %p110, %p111
      %p113 = scmp.ne.s32.totalorder %s99, %s100
      %p114 = scmp.eq.s32.totalorder %s40, 1
      %p115 = por %p113, %p114
      %p117 = scmp.ne.s32.totalorder %s100, %s116
      %p118 = scmp.eq.s32.totalorder %s40, 0
      %p119 = por %p117, %p118
      %s121 = sadd.s32 %s120, 1
      %p124 = scmp.eq.s32.totalorder %s34, 1
      %p125 = scmp.ne.s32.totalorder %s120, %s122
      %p126 = scmp.eq.s32.totalorder %s34, 0
      %p127 = por %p125, %p126
      %p128 = scmp.ne.s32.totalorder %s120, %s122
      %p129 = scmp.eq.s32.totalorder %s39, 1
      %p130 = por %p128, %p129
      %p131 = scmp.ne.s32.totalorder %s122, %s123
      %p132 = scmp.eq.s32.totalorder %s39, 0
      %p133 = por %p131, %p132
      %p134 = scmp.ne.s32.totalorder %s122, %s123
      %p135 = scmp.eq.s32.totalorder %s40, 1
      %p136 = por %p134, %p135
      %p138 = scmp.ne.s32.totalorder %s123, %s137
      %p139 = scmp.eq.s32.totalorder %s40, 0
      %p140 = por %p138, %p139
      %s142 = sadd.s32 %s141, 1
      %p145 = scmp.eq.s32.totalorder %s34, 1
      %p146 = scmp.ne.s32.totalorder %s141, %s143
      %p147 = scmp.eq.s32.totalorder %s34, 0
      %p148 = por %p146, %p147
      %p149 = scmp.ne.s32.totalorder %s141, %s143
      %p150 = scmp.eq.s32.totalorder %s39, 1
      %p151 = por %p149, %p150
      %p152 = scmp.ne.s32.totalorder %s143, %s144
      %p153 = scmp.eq.s32.totalorder %s39, 0
      %p154 = por %p152, %p153
      %p155 = scmp.ne.s32.totalorder %s143, %s144
      %p156 = scmp.eq.s32.totalorder %s40, 1
      %p157 = por %p155, %p156
      %p159 = scmp.ne.s32.totalorder %s144, %s158
      %p160 = scmp.eq.s32.totalorder %s40, 0
      %p161 = por %p159, %p160
      %s163 = sadd.s32 %s162, 1
      %p166 = scmp.eq.s32.totalorder %s34, 1
      %p167 = scmp.ne.s32.totalorder %s162, %s164
      %p168 = scmp.eq.s32.totalorder %s34, 0
      %p169 = por %p167, %p168
      %p170 = scmp.ne.s32.totalorder %s162, %s164
      %p171 = scmp.eq.s32.totalorder %s39, 1
      %p172 = por %p170, %p171
      %p173 = scmp.ne.s32.totalorder %s164, %s165
      %p174 = scmp.eq.s32.totalorder %s39, 0
      %p175 = por %p173, %p174
      %p176 = scmp.ne.s32.totalorder %s164, %s165
      %p177 = scmp.eq.s32.totalorder %s40, 1
      %p178 = por %p176, %p177
      %p180 = scmp.ne.s32.totalorder %s165, %s179
      %p181 = scmp.eq.s32.totalorder %s40, 0
      %p182 = por %p180, %p181
      %s184 = sadd.s32 %s183, 1
      %p187 = scmp.eq.s32.totalorder %s34, 1
      %p188 = scmp.ne.s32.totalorder %s183, %s185
      %p189 = scmp.eq.s32.totalorder %s34, 0
      %p190 = por %p188, %p189
      %p191 = scmp.ne.s32.totalorder %s183, %s185
      %p192 = scmp.eq.s32.totalorder %s39, 1
      %p193 = por %p191, %p192
      %p194 = scmp.ne.s32.totalorder %s185, %s186
      %p195 = scmp.eq.s32.totalorder %s39, 0
      %p196 = por %p194, %p195
      %p197 = scmp.ne.s32.totalorder %s185, %s186
      %p198 = scmp.eq.s32.totalorder %s40, 1
      %p199 = por %p197, %p198
      %p201 = scmp.ne.s32.totalorder %s186, %s200
      %p202 = scmp.eq.s32.totalorder %s40, 0
      %p203 = por %p201, %p202
      %s205 = sadd.s32 %s204, 1
      %p208 = scmp.eq.s32.totalorder %s34, 1
      %p209 = scmp.ne.s32.totalorder %s204, %s206
      %p210 = scmp.eq.s32.totalorder %s34, 0
      %p211 = por %p209, %p210
      %p212 = scmp.ne.s32.totalorder %s204, %s206
      %p213 = scmp.eq.s32.totalorder %s39, 1
      %p214 = por %p212, %p213
      %p215 = scmp.ne.s32.totalorder %s206, %s207
      %p216 = scmp.eq.s32.totalorder %s39, 0
      %p217 = por %p215, %p216
      %p218 = scmp.ne.s32.totalorder %s206, %s207
      %p219 = scmp.eq.s32.totalorder %s40, 1
      %p220 = por %p218, %p219
      %p222 = scmp.ne.s32.totalorder %s207, %s221
      %p223 = scmp.eq.s32.totalorder %s40, 0
      %p224 = por %p222, %p223
      %s226 = sadd.s32 %s225, 1
      %p229 = scmp.eq.s32.totalorder %s34, 1
      %p230 = scmp.ne.s32.totalorder %s225, %s227
      %p231 = scmp.eq.s32.totalorder %s34, 0
      %p232 = por %p230, %p231
      %p233 = scmp.ne.s32.totalorder %s225, %s227
      %p234 = scmp.eq.s32.totalorder %s39, 1
      %p235 = por %p233, %p234
      %p236 = scmp.ne.s32.totalorder %s227, %s228
      %p237 = scmp.eq.s32.totalorder %s39, 0
      %p238 = por %p236, %p237
      %p239 = scmp.ne.s32.totalorder %s227, %s228
      %p240 = scmp.eq.s32.totalorder %s40, 1
      %p241 = por %p239, %p240
      %p243 = scmp.ne.s32.totalorder %s228, %s242
      %p244 = scmp.eq.s32.totalorder %s40, 0
      %p245 = por %p243, %p244
      %s247 = sadd.s32 %s246, 1
      %p250 = scmp.eq.s32.totalorder %s34, 1
      %p251 = scmp.ne.s32.totalorder %s246, %s248
      %p252 = scmp.eq.s32.totalorder %s34, 0
      %p253 = por %p251, %p252
      %p254 = scmp.ne.s32.totalorder %s246, %s248
      %p255 = scmp.eq.s32.totalorder %s39, 1
      %p256 = por %p254, %p255
      %p257 = scmp.ne.s32.totalorder %s248, %s249
      %p258 = scmp.eq.s32.totalorder %s39, 0
      %p259 = por %p257, %p258
      %p260 = scmp.ne.s32.totalorder %s248, %s249
      %p261 = scmp.eq.s32.totalorder %s40, 1
      %p262 = por %p260, %p261
      %p264 = scmp.ne.s32.totalorder %s249, %s263
      %p265 = scmp.eq.s32.totalorder %s40, 0
      %p266 = por %p264, %p265
      %s268 = sadd.s32 %s267, 1
      %p271 = scmp.eq.s32.totalorder %s34, 1
      %p272 = scmp.ne.s32.totalorder %s267, %s269
      %p273 = scmp.eq.s32.totalorder %s34, 0
      %p274 = por %p272, %p273
      %p275 = scmp.ne.s32.totalorder %s267, %s269
      %p276 = scmp.eq.s32.totalorder %s39, 1
      %p277 = por %p275, %p276
      %p278 = scmp.ne.s32.totalorder %s269, %s270
      %p279 = scmp.eq.s32.totalorder %s39, 0
      %p280 = por %p278, %p279
      %p281 = scmp.ne.s32.totalorder %s269, %s270
      %p282 = scmp.eq.s32.totalorder %s40, 1
      %p283 = por %p281, %p282
      %p285 = scmp.ne.s32.totalorder %s270, %s284
      %p286 = scmp.eq.s32.totalorder %s40, 0
      %p287 = por %p285, %p286
      %s288 = ssub.s32 %s34, %s41
      %p289 = scmp.eq.s32.totalorder %s288, 0
      %s291 = sadd.s32 %s290, 1
      %s292 = scalar_select %p289, %s290, %s291
      %p295 = pneg %p289
      %p296 = scmp.eq.s32.totalorder %s34, 1
      %p297 = por %p295, %p296
      %p298 = scmp.ne.s32.totalorder %s290, %s293
      %p299 = scmp.eq.s32.totalorder %s34, 0
      %p300 = por %p298, %p299
      %p301 = scmp.ne.s32.totalorder %s290, %s293
      %p302 = scmp.eq.s32.totalorder %s39, 1
      %p303 = por %p301, %p302
      %p304 = scmp.ne.s32.totalorder %s293, %s294
      %p305 = scmp.eq.s32.totalorder %s39, 0
      %p306 = por %p304, %p305
      %p307 = scmp.ne.s32.totalorder %s293, %s294
      %p308 = scmp.eq.s32.totalorder %s40, 1
      %p309 = por %p307, %p308
      %p311 = scmp.ne.s32.totalorder %s294, %s310
      %p312 = scmp.eq.s32.totalorder %s40, 0
      %p313 = por %p311, %p312
      %s314 = ssub.s32 %s34, %s41
      %p315 = scmp.eq.s32.totalorder %s314, 0
      %s317 = sadd.s32 %s316, 1
      %s318 = scalar_select %p315, %s316, %s317
      %p321 = pneg %p315
      %p322 = scmp.eq.s32.totalorder %s34, 1
      %p323 = por %p321, %p322
      %p324 = scmp.ne.s32.totalorder %s316, %s319
      %p325 = scmp.eq.s32.totalorder %s34, 0
      %p326 = por %p324, %p325
      %p327 = scmp.ne.s32.totalorder %s316, %s319
      %p328 = scmp.eq.s32.totalorder %s39, 1
      %p329 = por %p327, %p328
      %p330 = scmp.ne.s32.totalorder %s319, %s320
      %p331 = scmp.eq.s32.totalorder %s39, 0
      %p332 = por %p330, %p331
      %p333 = scmp.ne.s32.totalorder %s319, %s320
      %p334 = scmp.eq.s32.totalorder %s40, 1
      %p335 = por %p333, %p334
      %p337 = scmp.ne.s32.totalorder %s320, %s336
      %p338 = scmp.eq.s32.totalorder %s40, 0
      %p339 = por %p337, %p338
      %p340 = scmp.le.s32.totalorder 1, %s34
      %p341 = scmp.lt.s32.totalorder %s34, 3
      %p342 = pnand %p340, %p341
      %p343 = pneg %p342
      // Predicated region
      $region9: #{multihead_attention_forward.1} parent=5 // pred_check
        _
      $region10: #{multihead_attention_forward.1} parent=5 // pred_check_branch
        %345 = sbr.rel (%p342) target = $region12
      $region11: #{multihead_attention_forward.1} parent=5 // pred_region
        %s346 = ssub.s32 %s34, 1
        // Predicated region
        $region13: #{multihead_attention_forward.1} parent=11 // pred_check
          %p347 = pneg %p133
        $region14: #{multihead_attention_forward.1} parent=11 // pred_check_branch
          %349 = sbr.rel (%p347) target = $region16
        $region15: #{multihead_attention_forward.1} parent=11 // pred_region
          _
        $region16: #{multihead_attention_forward.1} parent=11 // pred_fallthru
          _
        // Predicated region
        $region17: #{multihead_attention_forward.1} parent=11 // pred_check
          %p350 = pneg %p154
        $region18: #{multihead_attention_forward.1} parent=11 // pred_check_branch
          %352 = sbr.rel (%p350) target = $region20
        $region19: #{multihead_attention_forward.1} parent=11 // pred_region
          _
        $region20: #{multihead_attention_forward.1} parent=11 // pred_fallthru
          _
        // Predicated region
        $region21: #{multihead_attention_forward.1} parent=11 // pred_check
          %p353 = pneg %p175
        $region22: #{multihead_attention_forward.1} parent=11 // pred_check_branch
          %355 = sbr.rel (%p353) target = $region24
        $region23: #{multihead_attention_forward.1} parent=11 // pred_region
          %s357 = ssub.s32 512, 512
          %358 = vsyncadd [#allocation6], %s357
          %s359 = sshll.u32 [#allocation7], 4
          %s360 = int_to_ptr.vmem [resolvable:$true] %s359
          %365 = dma.hbm_to_vmem [thread:$0]  %s5, 512, %s360, [#allocation6], 128, 128, 8
        $region24: #{multihead_attention_forward.1} parent=11 // pred_fallthru
          _
        // Predicated region
        $region25: #{multihead_attention_forward.1} parent=11 // pred_check
          %p366 = pneg %p196
        $region26: #{multihead_attention_forward.1} parent=11 // pred_check_branch
          %368 = sbr.rel (%p366) target = $region28
        $region27: #{multihead_attention_forward.1} parent=11 // pred_region
          %s370 = ssub.s32 16, 16
          %371 = vsyncadd [#allocation9], %s370
          %s373 = sshll.u32 [#allocation8], 4
          %s374 = int_to_ptr.vmem [resolvable:$true] %s373
          %376 = dma.hbm_to_vmem [thread:$0]  %s6, 16, %s374, [#allocation9]
        $region28: #{multihead_attention_forward.1} parent=11 // pred_fallthru
          _
        // Predicated region
        $region29: #{multihead_attention_forward.1} parent=11 // pred_check
          %p377 = pneg %p217
        $region30: #{multihead_attention_forward.1} parent=11 // pred_check_branch
          %379 = sbr.rel (%p377) target = $region32
        $region31: #{multihead_attention_forward.1} parent=11 // pred_region
          %s381 = ssub.s32 512, 512
          %382 = vsyncadd [#allocation9], %s381
          %s383 = sshll.u32 [#allocation10], 4
          %s384 = int_to_ptr.vmem [resolvable:$true] %s383
          %389 = dma.hbm_to_vmem [thread:$0]  %s7, 512, %s384, [#allocation9], 128, 128, 8
        $region32: #{multihead_attention_forward.1} parent=11 // pred_fallthru
          _
        // Predicated region
        $region33: #{multihead_attention_forward.1} parent=11 // pred_check
          %p390 = pneg %p238
        $region34: #{multihead_attention_forward.1} parent=11 // pred_check_branch
          %392 = sbr.rel (%p390) target = $region36
        $region35: #{multihead_attention_forward.1} parent=11 // pred_region
          %s394 = ssub.s32 16, 16
          %395 = vsyncadd [#allocation12], %s394
          %s397 = sshll.u32 [#allocation11], 4
          %s398 = int_to_ptr.vmem [resolvable:$true] %s397
          %400 = dma.hbm_to_vmem [thread:$0]  %s8, 16, %s398, [#allocation12]
        $region36: #{multihead_attention_forward.1} parent=11 // pred_fallthru
          _
        // Predicated region
        $region37: #{multihead_attention_forward.1} parent=11 // pred_check
          %p401 = pneg %p259
        $region38: #{multihead_attention_forward.1} parent=11 // pred_check_branch
          %403 = sbr.rel (%p401) target = $region40
        $region39: #{multihead_attention_forward.1} parent=11 // pred_region
          %s405 = ssub.s32 512, 512
          %406 = vsyncadd [#allocation12], %s405
          %s407 = sshll.u32 [#allocation13], 4
          %s408 = int_to_ptr.vmem [resolvable:$true] %s407
          %413 = dma.hbm_to_vmem [thread:$0]  %s9, 512, %s408, [#allocation12], 128, 128, 8
        $region40: #{multihead_attention_forward.1} parent=11 // pred_fallthru
          _
        // Predicated region
        $region41: #{multihead_attention_forward.1} parent=11 // pred_check
          %p414 = pneg %p280
        $region42: #{multihead_attention_forward.1} parent=11 // pred_check_branch
          %416 = sbr.rel (%p414) target = $region44
        $region43: #{multihead_attention_forward.1} parent=11 // pred_region
          %s418 = ssub.s32 16, 16
          %419 = vsyncadd [#allocation15], %s418
          %s421 = sshll.u32 [#allocation14], 4
          %s422 = int_to_ptr.vmem [resolvable:$true] %s421
          %424 = dma.hbm_to_vmem [thread:$0]  %s10, 16, %s422, [#allocation15]
        $region44: #{multihead_attention_forward.1} parent=11 // pred_fallthru
          _
      $region12: #{multihead_attention_forward.1} parent=5 // pred_fallthru
        _
      %p425 = scmp.lt.s32.totalorder %s34, 2
      // Predicated region
      $region45: #{multihead_attention_forward.1} parent=5 // pred_check
        %p426 = pneg %p425
      $region46: #{multihead_attention_forward.1} parent=5 // pred_check_branch
        %428 = sbr.rel (%p426) target = $region48
      $region47: #{multihead_attention_forward.1} parent=5 // pred_region
        // Predicated region
        $region49: #{multihead_attention_forward.1} parent=47 // pred_check
          %p429 = pneg %p54
        $region50: #{multihead_attention_forward.1} parent=47 // pred_check_branch
          %431 = sbr.rel (%p429) target = $region52
        $region51: #{multihead_attention_forward.1} parent=47 // pred_region
          %s432 = sand.u32 %s44, 1
          %s433 = scalar_lea.sflag [#allocation3], %s432
          %s434 = sand.u32 %s44, 1
          %s435 = smul.addr %s434, 8
          %s436 = scalar_lea.vmem [#allocation2], %s435
          %s438 = ssub.s32 128, 128
          %439 = vsyncadd %s433, %s438
          %s440 = smul.addr %s34, 128
          %s441 = scalar_lea.hbm %s0, %s440
          %s443 = sshll.u32 %s436, 4
          %s444 = int_to_ptr.vmem [resolvable:$true] %s443
          %446 = dma.hbm_to_vmem [thread:$0]  %s441, 128, %s444, %s433
        $region52: #{multihead_attention_forward.1} parent=47 // pred_fallthru
          _
        // Predicated region
        $region53: #{multihead_attention_forward.1} parent=47 // pred_check
          %p447 = pneg %p80
        $region54: #{multihead_attention_forward.1} parent=47 // pred_check_branch
          %449 = sbr.rel (%p447) target = $region56
        $region55: #{multihead_attention_forward.1} parent=47 // pred_region
          %p450 = scmp.lt.s32.totalorder %s34, 1
          %s451 = scalar_select %p450, %s34, 1
          %s452 = smul.addr %s451, 8
          %s453 = scalar_lea.vmem %s1, %s452
        $region56: #{multihead_attention_forward.1} parent=47 // pred_fallthru
          _
        // Predicated region
        $region57: #{multihead_attention_forward.1} parent=47 // pred_check
          %p454 = pneg %p106
        $region58: #{multihead_attention_forward.1} parent=47 // pred_check_branch
          %456 = sbr.rel (%p454) target = $region60
        $region59: #{multihead_attention_forward.1} parent=47 // pred_region
          %s457 = sand.u32 %s34, 1
          %s458 = scalar_lea.sflag [#allocation6], %s457
          %s459 = sand.u32 %s96, 1
          %s460 = smul.addr %s459, 8
          %s461 = scalar_lea.vmem [#allocation5], %s460
          %s463 = ssub.s32 128, 128
          %464 = vsyncadd %s458, %s463
          %s465 = smul.addr %s34, 128
          %s466 = scalar_lea.hbm %s2, %s465
          %s468 = sshll.u32 %s461, 4
          %s469 = int_to_ptr.vmem [resolvable:$true] %s468
          %471 = dma.hbm_to_vmem [thread:$0]  %s466, 128, %s469, %s458
        $region60: #{multihead_attention_forward.1} parent=47 // pred_fallthru
          _
      $region48: #{multihead_attention_forward.1} parent=5 // pred_fallthru
        _
      %p472 = scmp.le.s32.totalorder 1, %s34
      %p473 = scmp.lt.s32.totalorder %s34, 3
      %p474 = pnand %p472, %p473
      %p475 = pneg %p474
      // Predicated region
      $region61: #{multihead_attention_forward.1} parent=5 // pred_check
        _
      $region62: #{multihead_attention_forward.1} parent=5 // pred_check_branch
        %477 = sbr.rel (%p474) target = $region64
      $region63: #{multihead_attention_forward.1} parent=5 // pred_region
        %s478 = ssub.s32 %s34, 1
        %s479 = sand.u32 %s47, 1
        %s480 = scalar_lea.sflag [#allocation3], %s479
        %s481 = sand.u32 %s47, 1
        %s482 = smul.addr %s481, 8
        %s483 = scalar_lea.vmem [#allocation2], %s482
        // Predicated region
        $region65: #{multihead_attention_forward.1} parent=63 // pred_check
          %p484 = pneg %p60
        $region66: #{multihead_attention_forward.1} parent=63 // pred_check_branch
          %486 = sbr.rel (%p484) target = $region68
        $region67: #{multihead_attention_forward.1} parent=63 // pred_region
          %487 = dma.done %s480, 128
        $region68: #{multihead_attention_forward.1} parent=63 // pred_fallthru
          _
        %s488 = sand.u32 %s39, 1
        %s489 = scalar_lea.sflag [#allocation6], %s488
        %s490 = sand.u32 %s99, 1
        %s491 = smul.addr %s490, 8
        %s492 = scalar_lea.vmem [#allocation5], %s491
        // Predicated region
        $region69: #{multihead_attention_forward.1} parent=63 // pred_check
          %p493 = pneg %p112
        $region70: #{multihead_attention_forward.1} parent=63 // pred_check_branch
          %495 = sbr.rel (%p493) target = $region72
        $region71: #{multihead_attention_forward.1} parent=63 // pred_region
          %496 = dma.done %s489, 128
        $region72: #{multihead_attention_forward.1} parent=63 // pred_fallthru
          _
        // Predicated region
        $region73: #{multihead_attention_forward.1} parent=63 // pred_check
          %p497 = pneg %p175
        $region74: #{multihead_attention_forward.1} parent=63 // pred_check_branch
          %499 = sbr.rel (%p497) target = $region76
        $region75: #{multihead_attention_forward.1} parent=63 // pred_region
          %500 = dma.done [#allocation6], 512
        $region76: #{multihead_attention_forward.1} parent=63 // pred_fallthru
          _
        // Predicated region
        $region77: #{multihead_attention_forward.1} parent=63 // pred_check
          %p501 = pneg %p196
        $region78: #{multihead_attention_forward.1} parent=63 // pred_check_branch
          %503 = sbr.rel (%p501) target = $region80
        $region79: #{multihead_attention_forward.1} parent=63 // pred_region
          %504 = dma.done [#allocation9], 16
        $region80: #{multihead_attention_forward.1} parent=63 // pred_fallthru
          _
        // Predicated region
        $region81: #{multihead_attention_forward.1} parent=63 // pred_check
          %p505 = pneg %p217
        $region82: #{multihead_attention_forward.1} parent=63 // pred_check_branch
          %507 = sbr.rel (%p505) target = $region84
        $region83: #{multihead_attention_forward.1} parent=63 // pred_region
          %508 = dma.done [#allocation9], 512
        $region84: #{multihead_attention_forward.1} parent=63 // pred_fallthru
          _
        // Predicated region
        $region85: #{multihead_attention_forward.1} parent=63 // pred_check
          %p509 = pneg %p238
        $region86: #{multihead_attention_forward.1} parent=63 // pred_check_branch
          %511 = sbr.rel (%p509) target = $region88
        $region87: #{multihead_attention_forward.1} parent=63 // pred_region
          %512 = dma.done [#allocation12], 16
        $region88: #{multihead_attention_forward.1} parent=63 // pred_fallthru
          _
        // Predicated region
        $region89: #{multihead_attention_forward.1} parent=63 // pred_check
          %p513 = pneg %p259
        $region90: #{multihead_attention_forward.1} parent=63 // pred_check_branch
          %515 = sbr.rel (%p513) target = $region92
        $region91: #{multihead_attention_forward.1} parent=63 // pred_region
          %516 = dma.done [#allocation12], 512
        $region92: #{multihead_attention_forward.1} parent=63 // pred_fallthru
          _
        // Predicated region
        $region93: #{multihead_attention_forward.1} parent=63 // pred_check
          %p517 = pneg %p280
        $region94: #{multihead_attention_forward.1} parent=63 // pred_check_branch
          %519 = sbr.rel (%p517) target = $region96
        $region95: #{multihead_attention_forward.1} parent=63 // pred_region
          %520 = dma.done [#allocation15], 16
        $region96: #{multihead_attention_forward.1} parent=63 // pred_fallthru
          _
        %s521 = sand.u32 %s47, 1
        %s522 = scalar_lea.sflag [#allocation3], %s521
        %s523 = sand.u32 %s47, 1
        %s524 = smul.addr %s523, 8
        %s525 = scalar_lea.vmem [#allocation2], %s524
        %p526 = pneg %p60
        %p527 = pneg %p57
        %p528 = scmp.lt.s32.totalorder %s39, 1
        %s529 = scalar_select %p528, %s39, 1
        %s530 = smul.addr %s529, 8
        %s531 = scalar_lea.vmem %s1, %s530
        %p532 = pneg %p86
        %p533 = pneg %p83
        %s534 = sand.u32 %s39, 1
        %s535 = scalar_lea.sflag [#allocation6], %s534
        %s536 = sand.u32 %s99, 1
        %s537 = smul.addr %s536, 8
        %s538 = scalar_lea.vmem [#allocation5], %s537
        %p539 = pneg %p112
        %p540 = pneg %p109
        %p541 = pneg %p133
        %p542 = pneg %p130
        %p543 = pneg %p154
        %p544 = pneg %p151
        %p545 = pneg %p175
        %p546 = pneg %p172
        %p547 = pneg %p196
        %p548 = pneg %p193
        %p549 = pneg %p217
        %p550 = pneg %p214
        %p551 = pneg %p238
        %p552 = pneg %p235
        %p553 = pneg %p259
        %p554 = pneg %p256
        %p555 = pneg %p280
        %p556 = pneg %p277
        %p557 = pneg %p306
        %p558 = pneg %p303
        %s559 = sand.u32 %s293, 1
        %s560 = scalar_lea.sflag [#allocation4], %s559
        %s561 = sand.u32 %s293, 1
        %s562 = smul.addr %s561, 8
        %s563 = scalar_lea.vmem [#allocation16], %s562
        %p564 = pneg %p332
        %p565 = pneg %p329
        %s566 = sand.u32 %s319, 1
        %s567 = scalar_lea.sflag [#allocation18], %s566
        %s568 = sand.u32 %s319, 1
        %s569 = smul.addr %s568, 32
        %s570 = scalar_lea.vmem [#allocation17], %s569
        %p571 = scmp.lt.s32.totalorder %s39, 1
        %s572 = scalar_select %p571, %s39, 1
        %s573 = smul.addr %s572, 8
        %s574 = scalar_lea.vmem %s1, %s573
        %v575 = vld [vmem:[%s483] sm:$0xff]
        %v576 = vld [vmem:[%s574] sm:$0xff]
        %v577 = vld [vmem:[%s492] sm:$0xff]
        %v578 = vld [vmem:[%s3] sm:$0xff]
        %v579 = vld [vmem:[%s3 + $0x8] sm:$0xff]
        %v580 = vld [vmem:[%s3 + $0x10] sm:$0xff]
        %v581 = vld [vmem:[%s3 + $0x18] sm:$0xff]
        %v582 = vld [vmem:[%s4] sm:$0x1]
        %v584 = vlaneseq
        %v585 = vshrl.u32 %v584, 7
        %v586 = vsub.s32 0, %v585
        %v587 = vrot.slane %v582, %v586
        %vm589 = vcmask 261120
        %v591 = vsel %vm589, %v575, 0
        %v594 = vsel %vm589, %v578, 0
        %v597 = vsel %vm589, %v579, 0
        %v600 = vsel %vm589, %v580, 0
        %v603 = vsel %vm589, %v581, 0
        %605 = vmatprep.subr.mxu0 0.0
        %606 = vmatpush1.xpose.msra.mxu0 %v594
        %607 = vmatprep.subr.mxu0 0.0
        %608 = vmatpush1.xpose.msra.mxu0 %v597
        %609 = vmatprep.subr.mxu0 0.0
        %610 = vmatpush1.xpose.msra.mxu0 %v600
        %611 = vmatprep.subr.mxu0 0.0
        %612 = vmatpush1.xpose.msra.mxu0 %v603
        %613 = vmatprep.subr.mxu0 0.0
        %614 = vmatpush1.xpose.msra.mxu0 0.0
        %615 = vmatprep.subr.mxu0 0.0
        %616 = vmatpush1.xpose.msra.mxu0 0.0
        %617 = vmatprep.subr.mxu0 0.0
        %618 = vmatpush1.xpose.msra.mxu0 0.0
        %619 = vmatprep.subr.mxu0 0.0
        %620 = vmatpush1.xpose.msra.mxu0 0.0
        %621 = vmatprep.subr.mxu0 0.0
        %622 = vmatpush1.xpose.msra.mxu0 0.0
        %623 = vmatprep.subr.mxu0 0.0
        %624 = vmatpush1.xpose.msra.mxu0 0.0
        %625 = vmatprep.subr.mxu0 0.0
        %626 = vmatpush1.xpose.msra.mxu0 0.0
        %627 = vmatprep.subr.mxu0 0.0
        %628 = vmatpush1.xpose.msra.mxu0 0.0
        %629 = vmatprep.subr.mxu0 0.0
        %630 = vmatpush1.xpose.msra.mxu0 0.0
        %631 = vmatprep.subr.mxu0 0.0
        %632 = vmatpush1.xpose.msra.mxu0 0.0
        %633 = vmatprep.subr.mxu0 0.0
        %634 = vmatpush1.xpose.msra.mxu0 0.0
        %635 = vmatprep.subr.mxu0 0.0
        %636 = vmatpush1.xpose.msra.mxu0 0.0
        %637 = vmatprep.subr.mxu0 0.0
        %638 = vmatpush1.xpose.msra.mxu0 0.0
        %639 = vmatprep.subr.mxu0 0.0
        %640 = vmatpush1.xpose.msra.mxu0 0.0
        %641 = vmatprep.subr.mxu0 0.0
        %642 = vmatpush1.xpose.msra.mxu0 0.0
        %643 = vmatprep.subr.mxu0 0.0
        %644 = vmatpush1.xpose.msra.mxu0 0.0
        %645 = vmatprep.subr.mxu0 0.0
        %646 = vmatpush1.xpose.msra.mxu0 0.0
        %647 = vmatprep.subr.mxu0 0.0
        %648 = vmatpush1.xpose.msra.mxu0 0.0
        %649 = vmatprep.subr.mxu0 0.0
        %650 = vmatpush1.xpose.msra.mxu0 0.0
        %651 = vmatprep.subr.mxu0 0.0
        %652 = vmatpush1.xpose.msra.mxu0 0.0
        %653 = vmatprep.subr.mxu0 0.0
        %654 = vmatpush1.xpose.msra.mxu0 0.0
        %655 = vmatprep.subr.mxu0 0.0
        %656 = vmatpush1.xpose.msra.mxu0 0.0
        %657 = vmatprep.subr.mxu0 0.0
        %658 = vmatpush1.xpose.msra.mxu0 0.0
        %659 = vmatprep.subr.mxu0 0.0
        %660 = vmatpush1.xpose.msra.mxu0 0.0
        %661 = vmatprep.subr.mxu0 0.0
        %662 = vmatpush1.xpose.msra.mxu0 0.0
        %663 = vmatprep.subr.mxu0 0.0
        %664 = vmatpush1.xpose.msra.mxu0 0.0
        %665 = vmatprep.subr.mxu0 0.0
        %666 = vmatpush1.xpose.msra.mxu0 0.0
        %667 = vmatprep.subr.mxu0 0.0
        %668 = vmatpush1.xpose.msra.mxu0 0.0
        %669 = vmatprep.mubr.f32.mxu0 0.0
        %670 = vmatmul.mubr.f32.gmra.mrb[0].mxu0 %v591
        %v671 = vpop.f32.mrb[0].mxu0
        %v672 = vadd.f32 %v587, %v671
        %v673 = vpop.f32.mrb[0].mxu0
        %674 = vdwg.mxu0
        %v675 = vld [vmem:[#allocation7] sm:$0xff]
        %v676 = vld [vmem:[#allocation7 + $0x8] sm:$0xff]
        %v677 = vld [vmem:[#allocation7 + $0x10] sm:$0xff]
        %v678 = vld [vmem:[#allocation7 + $0x18] sm:$0xff]
        %v679 = vld [vmem:[#allocation8] sm:$0x1]
        %v681 = vlaneseq
        %v682 = vshrl.u32 %v681, 7
        %v683 = vsub.s32 0, %v682
        %v684 = vrot.slane %v679, %v683
        %v687 = vsel %vm589, %v576, 0
        %v690 = vsel %vm589, %v675, 0
        %v693 = vsel %vm589, %v676, 0
        %v696 = vsel %vm589, %v677, 0
        %v699 = vsel %vm589, %v678, 0
        %701 = vmatprep.subr.mxu0 0.0
        %702 = vmatpush1.xpose.msra.mxu0 %v690
        %703 = vmatprep.subr.mxu0 0.0
        %704 = vmatpush1.xpose.msra.mxu0 %v693
        %705 = vmatprep.subr.mxu0 0.0
        %706 = vmatpush1.xpose.msra.mxu0 %v696
        %707 = vmatprep.subr.mxu0 0.0
        %708 = vmatpush1.xpose.msra.mxu0 %v699
        %709 = vmatprep.subr.mxu0 0.0
        %710 = vmatpush1.xpose.msra.mxu0 0.0
        %711 = vmatprep.subr.mxu0 0.0
        %712 = vmatpush1.xpose.msra.mxu0 0.0
        %713 = vmatprep.subr.mxu0 0.0
        %714 = vmatpush1.xpose.msra.mxu0 0.0
        %715 = vmatprep.subr.mxu0 0.0
        %716 = vmatpush1.xpose.msra.mxu0 0.0
        %717 = vmatprep.subr.mxu0 0.0
        %718 = vmatpush1.xpose.msra.mxu0 0.0
        %719 = vmatprep.subr.mxu0 0.0
        %720 = vmatpush1.xpose.msra.mxu0 0.0
        %721 = vmatprep.subr.mxu0 0.0
        %722 = vmatpush1.xpose.msra.mxu0 0.0
        %723 = vmatprep.subr.mxu0 0.0
        %724 = vmatpush1.xpose.msra.mxu0 0.0
        %725 = vmatprep.subr.mxu0 0.0
        %726 = vmatpush1.xpose.msra.mxu0 0.0
        %727 = vmatprep.subr.mxu0 0.0
        %728 = vmatpush1.xpose.msra.mxu0 0.0
        %729 = vmatprep.subr.mxu0 0.0
        %730 = vmatpush1.xpose.msra.mxu0 0.0
        %731 = vmatprep.subr.mxu0 0.0
        %732 = vmatpush1.xpose.msra.mxu0 0.0
        %733 = vmatprep.subr.mxu0 0.0
        %734 = vmatpush1.xpose.msra.mxu0 0.0
        %735 = vmatprep.subr.mxu0 0.0
        %736 = vmatpush1.xpose.msra.mxu0 0.0
        %737 = vmatprep.subr.mxu0 0.0
        %738 = vmatpush1.xpose.msra.mxu0 0.0
        %739 = vmatprep.subr.mxu0 0.0
        %740 = vmatpush1.xpose.msra.mxu0 0.0
        %741 = vmatprep.subr.mxu0 0.0
        %742 = vmatpush1.xpose.msra.mxu0 0.0
        %743 = vmatprep.subr.mxu0 0.0
        %744 = vmatpush1.xpose.msra.mxu0 0.0
        %745 = vmatprep.subr.mxu0 0.0
        %746 = vmatpush1.xpose.msra.mxu0 0.0
        %747 = vmatprep.subr.mxu0 0.0
        %748 = vmatpush1.xpose.msra.mxu0 0.0
        %749 = vmatprep.subr.mxu0 0.0
        %750 = vmatpush1.xpose.msra.mxu0 0.0
        %751 = vmatprep.subr.mxu0 0.0
        %752 = vmatpush1.xpose.msra.mxu0 0.0
        %753 = vmatprep.subr.mxu0 0.0
        %754 = vmatpush1.xpose.msra.mxu0 0.0
        %755 = vmatprep.subr.mxu0 0.0
        %756 = vmatpush1.xpose.msra.mxu0 0.0
        %757 = vmatprep.subr.mxu0 0.0
        %758 = vmatpush1.xpose.msra.mxu0 0.0
        %759 = vmatprep.subr.mxu0 0.0
        %760 = vmatpush1.xpose.msra.mxu0 0.0
        %761 = vmatprep.subr.mxu0 0.0
        %762 = vmatpush1.xpose.msra.mxu0 0.0
        %763 = vmatprep.subr.mxu0 0.0
        %764 = vmatpush1.xpose.msra.mxu0 0.0
        %765 = vmatprep.mubr.f32.mxu0 0.0
        %766 = vmatmul.mubr.f32.gmra.mrb[0].mxu0 %v687
        %v767 = vpop.f32.mrb[0].mxu0
        %v768 = vadd.f32 %v684, %v767
        %v769 = vpop.f32.mrb[0].mxu0
        %770 = vdwg.mxu0
        %v771 = vld [vmem:[#allocation10] sm:$0xff]
        %v772 = vld [vmem:[#allocation10 + $0x8] sm:$0xff]
        %v773 = vld [vmem:[#allocation10 + $0x10] sm:$0xff]
        %v774 = vld [vmem:[#allocation10 + $0x18] sm:$0xff]
        %v775 = vld [vmem:[#allocation11] sm:$0x1]
        %v777 = vlaneseq
        %v778 = vshrl.u32 %v777, 7
        %v779 = vsub.s32 0, %v778
        %v780 = vrot.slane %v775, %v779
        %v783 = vsel %vm589, %v577, 0
        %v786 = vsel %vm589, %v771, 0
        %v789 = vsel %vm589, %v772, 0
        %v792 = vsel %vm589, %v773, 0
        %v795 = vsel %vm589, %v774, 0
        %797 = vmatprep.subr.mxu0 0.0
        %798 = vmatpush1.xpose.msra.mxu0 %v786
        %799 = vmatprep.subr.mxu0 0.0
        %800 = vmatpush1.xpose.msra.mxu0 %v789
        %801 = vmatprep.subr.mxu0 0.0
        %802 = vmatpush1.xpose.msra.mxu0 %v792
        %803 = vmatprep.subr.mxu0 0.0
        %804 = vmatpush1.xpose.msra.mxu0 %v795
        %805 = vmatprep.subr.mxu0 0.0
        %806 = vmatpush1.xpose.msra.mxu0 0.0
        %807 = vmatprep.subr.mxu0 0.0
        %808 = vmatpush1.xpose.msra.mxu0 0.0
        %809 = vmatprep.subr.mxu0 0.0
        %810 = vmatpush1.xpose.msra.mxu0 0.0
        %811 = vmatprep.subr.mxu0 0.0
        %812 = vmatpush1.xpose.msra.mxu0 0.0
        %813 = vmatprep.subr.mxu0 0.0
        %814 = vmatpush1.xpose.msra.mxu0 0.0
        %815 = vmatprep.subr.mxu0 0.0
        %816 = vmatpush1.xpose.msra.mxu0 0.0
        %817 = vmatprep.subr.mxu0 0.0
        %818 = vmatpush1.xpose.msra.mxu0 0.0
        %819 = vmatprep.subr.mxu0 0.0
        %820 = vmatpush1.xpose.msra.mxu0 0.0
        %821 = vmatprep.subr.mxu0 0.0
        %822 = vmatpush1.xpose.msra.mxu0 0.0
        %823 = vmatprep.subr.mxu0 0.0
        %824 = vmatpush1.xpose.msra.mxu0 0.0
        %825 = vmatprep.subr.mxu0 0.0
        %826 = vmatpush1.xpose.msra.mxu0 0.0
        %827 = vmatprep.subr.mxu0 0.0
        %828 = vmatpush1.xpose.msra.mxu0 0.0
        %829 = vmatprep.subr.mxu0 0.0
        %830 = vmatpush1.xpose.msra.mxu0 0.0
        %831 = vmatprep.subr.mxu0 0.0
        %832 = vmatpush1.xpose.msra.mxu0 0.0
        %833 = vmatprep.subr.mxu0 0.0
        %834 = vmatpush1.xpose.msra.mxu0 0.0
        %835 = vmatprep.subr.mxu0 0.0
        %836 = vmatpush1.xpose.msra.mxu0 0.0
        %837 = vmatprep.subr.mxu0 0.0
        %838 = vmatpush1.xpose.msra.mxu0 0.0
        %839 = vmatprep.subr.mxu0 0.0
        %840 = vmatpush1.xpose.msra.mxu0 0.0
        %841 = vmatprep.subr.mxu0 0.0
        %842 = vmatpush1.xpose.msra.mxu0 0.0
        %843 = vmatprep.subr.mxu0 0.0
        %844 = vmatpush1.xpose.msra.mxu0 0.0
        %845 = vmatprep.subr.mxu0 0.0
        %846 = vmatpush1.xpose.msra.mxu0 0.0
        %847 = vmatprep.subr.mxu0 0.0
        %848 = vmatpush1.xpose.msra.mxu0 0.0
        %849 = vmatprep.subr.mxu0 0.0
        %850 = vmatpush1.xpose.msra.mxu0 0.0
        %851 = vmatprep.subr.mxu0 0.0
        %852 = vmatpush1.xpose.msra.mxu0 0.0
        %853 = vmatprep.subr.mxu0 0.0
        %854 = vmatpush1.xpose.msra.mxu0 0.0
        %855 = vmatprep.subr.mxu0 0.0
        %856 = vmatpush1.xpose.msra.mxu0 0.0
        %857 = vmatprep.subr.mxu0 0.0
        %858 = vmatpush1.xpose.msra.mxu0 0.0
        %859 = vmatprep.subr.mxu0 0.0
        %860 = vmatpush1.xpose.msra.mxu0 0.0
        %861 = vmatprep.mubr.f32.mxu0 0.0
        %862 = vmatmul.mubr.f32.gmra.mrb[0].mxu0 %v783
        %v863 = vpop.f32.mrb[0].mxu0
        %v864 = vadd.f32 %v780, %v863
        %v865 = vpop.f32.mrb[0].mxu0
        %866 = vdwg.mxu0
        %v867 = vmul.f32 %v672, 0.35355338
        %vm868 = vcmask 64512
        %v870 = vsel %vm868, %v867, 0
        %v873 = vsel %vm868, %v768, 0
        %875 = vmatprep.subr.mxu0 0.0
        %876 = vmatpush1.xpose.msra.mxu0 %v873
        %877 = vmatprep.subr.mxu0 0.0
        %878 = vmatpush1.xpose.msra.mxu0 0.0
        %879 = vmatprep.subr.mxu0 0.0
        %880 = vmatpush1.xpose.msra.mxu0 0.0
        %881 = vmatprep.subr.mxu0 0.0
        %882 = vmatpush1.xpose.msra.mxu0 0.0
        %883 = vmatprep.subr.mxu0 0.0
        %884 = vmatpush1.xpose.msra.mxu0 0.0
        %885 = vmatprep.subr.mxu0 0.0
        %886 = vmatpush1.xpose.msra.mxu0 0.0
        %887 = vmatprep.subr.mxu0 0.0
        %888 = vmatpush1.xpose.msra.mxu0 0.0
        %889 = vmatprep.subr.mxu0 0.0
        %890 = vmatpush1.xpose.msra.mxu0 0.0
        %891 = vmatprep.subr.mxu0 0.0
        %892 = vmatpush1.xpose.msra.mxu0 0.0
        %893 = vmatprep.subr.mxu0 0.0
        %894 = vmatpush1.xpose.msra.mxu0 0.0
        %895 = vmatprep.subr.mxu0 0.0
        %896 = vmatpush1.xpose.msra.mxu0 0.0
        %897 = vmatprep.subr.mxu0 0.0
        %898 = vmatpush1.xpose.msra.mxu0 0.0
        %899 = vmatprep.subr.mxu0 0.0
        %900 = vmatpush1.xpose.msra.mxu0 0.0
        %901 = vmatprep.subr.mxu0 0.0
        %902 = vmatpush1.xpose.msra.mxu0 0.0
        %903 = vmatprep.subr.mxu0 0.0
        %904 = vmatpush1.xpose.msra.mxu0 0.0
        %905 = vmatprep.subr.mxu0 0.0
        %906 = vmatpush1.xpose.msra.mxu0 0.0
        %907 = vmatprep.subr.mxu0 0.0
        %908 = vmatpush1.xpose.msra.mxu0 0.0
        %909 = vmatprep.subr.mxu0 0.0
        %910 = vmatpush1.xpose.msra.mxu0 0.0
        %911 = vmatprep.subr.mxu0 0.0
        %912 = vmatpush1.xpose.msra.mxu0 0.0
        %913 = vmatprep.subr.mxu0 0.0
        %914 = vmatpush1.xpose.msra.mxu0 0.0
        %915 = vmatprep.subr.mxu0 0.0
        %916 = vmatpush1.xpose.msra.mxu0 0.0
        %917 = vmatprep.subr.mxu0 0.0
        %918 = vmatpush1.xpose.msra.mxu0 0.0
        %919 = vmatprep.subr.mxu0 0.0
        %920 = vmatpush1.xpose.msra.mxu0 0.0
        %921 = vmatprep.subr.mxu0 0.0
        %922 = vmatpush1.xpose.msra.mxu0 0.0
        %923 = vmatprep.subr.mxu0 0.0
        %924 = vmatpush1.xpose.msra.mxu0 0.0
        %925 = vmatprep.subr.mxu0 0.0
        %926 = vmatpush1.xpose.msra.mxu0 0.0
        %927 = vmatprep.subr.mxu0 0.0
        %928 = vmatpush1.xpose.msra.mxu0 0.0
        %929 = vmatprep.subr.mxu0 0.0
        %930 = vmatpush1.xpose.msra.mxu0 0.0
        %931 = vmatprep.subr.mxu0 0.0
        %932 = vmatpush1.xpose.msra.mxu0 0.0
        %933 = vmatprep.subr.mxu0 0.0
        %934 = vmatpush1.xpose.msra.mxu0 0.0
        %935 = vmatprep.subr.mxu0 0.0
        %936 = vmatpush1.xpose.msra.mxu0 0.0
        %937 = vmatprep.subr.mxu0 0.0
        %938 = vmatpush1.xpose.msra.mxu0 0.0
        %939 = vmatprep.mubr.f32.mxu0 0.0
        %940 = vmatmul.mubr.f32.gmra.mrb[0].mxu0 %v870
        %v941 = vpop.f32.mrb[0].mxu0
        %v942 = vadd.f32 0.0, %v941
        %v943 = vpop.f32.mrb[0].mxu0
        %944 = vdwg.mxu0
        %v945 = vsel %vm868, %v942, -inf
        %946 = vmax.xlane.f32.xlu0 %v945
        %v947 = vpop.xlane.xlu0 %946
        %v948 = vsub.f32 %v942, %v947
        %v949 = vmul.f32 %v948, 1.442695
        %v950 = vpow.pop %v949
        %v951 = vsel %vm868, %v950, 0.0
        %952 = vadd.xlane.f32.xlu0 %v951
        %v953 = vpop.xlane.xlu0 %952
        %v954 = vrcp.pop %v953
        %v955 = vmul.f32 %v950, %v954
        %v957 = vsel %vm868, %v955, 0
        %959 = vmatprep.subr.mxu0 0.0
        %960 = vmatpush1.msra.mxu0 %v864
        %961 = vmatprep.subr.mxu0 0.0
        %962 = vmatpush1.msra.mxu0 0.0
        %963 = vmatprep.subr.mxu0 0.0
        %964 = vmatpush1.msra.mxu0 0.0
        %965 = vmatprep.subr.mxu0 0.0
        %966 = vmatpush1.msra.mxu0 0.0
        %967 = vmatprep.subr.mxu0 0.0
        %968 = vmatpush1.msra.mxu0 0.0
        %969 = vmatprep.subr.mxu0 0.0
        %970 = vmatpush1.msra.mxu0 0.0
        %971 = vmatprep.subr.mxu0 0.0
        %972 = vmatpush1.msra.mxu0 0.0
        %973 = vmatprep.subr.mxu0 0.0
        %974 = vmatpush1.msra.mxu0 0.0
        %975 = vmatprep.subr.mxu0 0.0
        %976 = vmatpush1.msra.mxu0 0.0
        %977 = vmatprep.subr.mxu0 0.0
        %978 = vmatpush1.msra.mxu0 0.0
        %979 = vmatprep.subr.mxu0 0.0
        %980 = vmatpush1.msra.mxu0 0.0
        %981 = vmatprep.subr.mxu0 0.0
        %982 = vmatpush1.msra.mxu0 0.0
        %983 = vmatprep.subr.mxu0 0.0
        %984 = vmatpush1.msra.mxu0 0.0
        %985 = vmatprep.subr.mxu0 0.0
        %986 = vmatpush1.msra.mxu0 0.0
        %987 = vmatprep.subr.mxu0 0.0
        %988 = vmatpush1.msra.mxu0 0.0
        %989 = vmatprep.subr.mxu0 0.0
        %990 = vmatpush1.msra.mxu0 0.0
        %991 = vmatprep.subr.mxu0 0.0
        %992 = vmatpush1.msra.mxu0 0.0
        %993 = vmatprep.subr.mxu0 0.0
        %994 = vmatpush1.msra.mxu0 0.0
        %995 = vmatprep.subr.mxu0 0.0
        %996 = vmatpush1.msra.mxu0 0.0
        %997 = vmatprep.subr.mxu0 0.0
        %998 = vmatpush1.msra.mxu0 0.0
        %999 = vmatprep.subr.mxu0 0.0
        %1000 = vmatpush1.msra.mxu0 0.0
        %1001 = vmatprep.subr.mxu0 0.0
        %1002 = vmatpush1.msra.mxu0 0.0
        %1003 = vmatprep.subr.mxu0 0.0
        %1004 = vmatpush1.msra.mxu0 0.0
        %1005 = vmatprep.subr.mxu0 0.0
        %1006 = vmatpush1.msra.mxu0 0.0
        %1007 = vmatprep.subr.mxu0 0.0
        %1008 = vmatpush1.msra.mxu0 0.0
        %1009 = vmatprep.subr.mxu0 0.0
        %1010 = vmatpush1.msra.mxu0 0.0
        %1011 = vmatprep.subr.mxu0 0.0
        %1012 = vmatpush1.msra.mxu0 0.0
        %1013 = vmatprep.subr.mxu0 0.0
        %1014 = vmatpush1.msra.mxu0 0.0
        %1015 = vmatprep.subr.mxu0 0.0
        %1016 = vmatpush1.msra.mxu0 0.0
        %1017 = vmatprep.subr.mxu0 0.0
        %1018 = vmatpush1.msra.mxu0 0.0
        %1019 = vmatprep.subr.mxu0 0.0
        %1020 = vmatpush1.msra.mxu0 0.0
        %1021 = vmatprep.subr.mxu0 0.0
        %1022 = vmatpush1.msra.mxu0 0.0
        %1023 = vmatprep.mubr.f32.mxu0 0.0
        %1024 = vmatmul.mubr.f32.gmra.mrb[0].mxu0 %v957
        %v1025 = vpop.f32.mrb[0].mxu0
        %v1026 = vadd.f32 0.0, %v1025
        %v1027 = vpop.f32.mrb[0].mxu0
        %1028 = vdwg.mxu0
        %1029 = vrot.lane.b32.xlu0 %v867, 120
        %v1030 = vpop.permute.xlu0 %1029
        %1031 = vrot.lane.b32.xlu0 %v768, 120
        %v1032 = vpop.permute.xlu0 %1031
        %v1033 = vsel %vm868, %v1030, 0
        %v1035 = vsel %vm868, %v1032, 0
        %1037 = vmatprep.subr.mxu0 0.0
        %1038 = vmatpush1.xpose.msra.mxu0 %v1035
        %1039 = vmatprep.subr.mxu0 0.0
        %1040 = vmatpush1.xpose.msra.mxu0 0.0
        %1041 = vmatprep.subr.mxu0 0.0
        %1042 = vmatpush1.xpose.msra.mxu0 0.0
        %1043 = vmatprep.subr.mxu0 0.0
        %1044 = vmatpush1.xpose.msra.mxu0 0.0
        %1045 = vmatprep.subr.mxu0 0.0
        %1046 = vmatpush1.xpose.msra.mxu0 0.0
        %1047 = vmatprep.subr.mxu0 0.0
        %1048 = vmatpush1.xpose.msra.mxu0 0.0
        %1049 = vmatprep.subr.mxu0 0.0
        %1050 = vmatpush1.xpose.msra.mxu0 0.0
        %1051 = vmatprep.subr.mxu0 0.0
        %1052 = vmatpush1.xpose.msra.mxu0 0.0
        %1053 = vmatprep.subr.mxu0 0.0
        %1054 = vmatpush1.xpose.msra.mxu0 0.0
        %1055 = vmatprep.subr.mxu0 0.0
        %1056 = vmatpush1.xpose.msra.mxu0 0.0
        %1057 = vmatprep.subr.mxu0 0.0
        %1058 = vmatpush1.xpose.msra.mxu0 0.0
        %1059 = vmatprep.subr.mxu0 0.0
        %1060 = vmatpush1.xpose.msra.mxu0 0.0
        %1061 = vmatprep.subr.mxu0 0.0
        %1062 = vmatpush1.xpose.msra.mxu0 0.0
        %1063 = vmatprep.subr.mxu0 0.0
        %1064 = vmatpush1.xpose.msra.mxu0 0.0
        %1065 = vmatprep.subr.mxu0 0.0
        %1066 = vmatpush1.xpose.msra.mxu0 0.0
        %1067 = vmatprep.subr.mxu0 0.0
        %1068 = vmatpush1.xpose.msra.mxu0 0.0
        %1069 = vmatprep.subr.mxu0 0.0
        %1070 = vmatpush1.xpose.msra.mxu0 0.0
        %1071 = vmatprep.subr.mxu0 0.0
        %1072 = vmatpush1.xpose.msra.mxu0 0.0
        %1073 = vmatprep.subr.mxu0 0.0
        %1074 = vmatpush1.xpose.msra.mxu0 0.0
        %1075 = vmatprep.subr.mxu0 0.0
        %1076 = vmatpush1.xpose.msra.mxu0 0.0
        %1077 = vmatprep.subr.mxu0 0.0
        %1078 = vmatpush1.xpose.msra.mxu0 0.0
        %1079 = vmatprep.subr.mxu0 0.0
        %1080 = vmatpush1.xpose.msra.mxu0 0.0
        %1081 = vmatprep.subr.mxu0 0.0
        %1082 = vmatpush1.xpose.msra.mxu0 0.0
        %1083 = vmatprep.subr.mxu0 0.0
        %1084 = vmatpush1.xpose.msra.mxu0 0.0
        %1085 = vmatprep.subr.mxu0 0.0
        %1086 = vmatpush1.xpose.msra.mxu0 0.0
        %1087 = vmatprep.subr.mxu0 0.0
        %1088 = vmatpush1.xpose.msra.mxu0 0.0
        %1089 = vmatprep.subr.mxu0 0.0
        %1090 = vmatpush1.xpose.msra.mxu0 0.0
        %1091 = vmatprep.subr.mxu0 0.0
        %1092 = vmatpush1.xpose.msra.mxu0 0.0
        %1093 = vmatprep.subr.mxu0 0.0
        %1094 = vmatpush1.xpose.msra.mxu0 0.0
        %1095 = vmatprep.subr.mxu0 0.0
        %1096 = vmatpush1.xpose.msra.mxu0 0.0
        %1097 = vmatprep.subr.mxu0 0.0
        %1098 = vmatpush1.xpose.msra.mxu0 0.0
        %1099 = vmatprep.subr.mxu0 0.0
        %1100 = vmatpush1.xpose.msra.mxu0 0.0
        %1101 = vmatprep.mubr.f32.mxu0 0.0
        %1102 = vmatmul.mubr.f32.gmra.mrb[0].mxu0 %v1033
        %v1103 = vpop.f32.mrb[0].mxu0
        %v1104 = vadd.f32 0.0, %v1103
        %v1105 = vpop.f32.mrb[0].mxu0
        %1106 = vdwg.mxu0
        %v1107 = vsel %vm868, %v1104, -inf
        %1108 = vmax.xlane.f32.xlu0 %v1107
        %v1109 = vpop.xlane.xlu0 %1108
        %v1110 = vsub.f32 %v1104, %v1109
        %v1111 = vmul.f32 %v1110, 1.442695
        %v1112 = vpow.pop %v1111
        %v1113 = vsel %vm868, %v1112, 0.0
        %1114 = vadd.xlane.f32.xlu0 %v1113
        %v1115 = vpop.xlane.xlu0 %1114
        %v1116 = vrcp.pop %v1115
        %v1117 = vmul.f32 %v1112, %v1116
        %1119 = vrot.lane.b32.xlu0 %v864, 120
        %v1120 = vpop.permute.xlu0 %1119
        %v1123 = vsel %vm868, %v1117, 0
        %1125 = vmatprep.subr.mxu0 0.0
        %1126 = vmatpush1.msra.mxu0 %v1120
        %1127 = vmatprep.subr.mxu0 0.0
        %1128 = vmatpush1.msra.mxu0 0.0
        %1129 = vmatprep.subr.mxu0 0.0
        %1130 = vmatpush1.msra.mxu0 0.0
        %1131 = vmatprep.subr.mxu0 0.0
        %1132 = vmatpush1.msra.mxu0 0.0
        %1133 = vmatprep.subr.mxu0 0.0
        %1134 = vmatpush1.msra.mxu0 0.0
        %1135 = vmatprep.subr.mxu0 0.0
        %1136 = vmatpush1.msra.mxu0 0.0
        %1137 = vmatprep.subr.mxu0 0.0
        %1138 = vmatpush1.msra.mxu0 0.0
        %1139 = vmatprep.subr.mxu0 0.0
        %1140 = vmatpush1.msra.mxu0 0.0
        %1141 = vmatprep.subr.mxu0 0.0
        %1142 = vmatpush1.msra.mxu0 0.0
        %1143 = vmatprep.subr.mxu0 0.0
        %1144 = vmatpush1.msra.mxu0 0.0
        %1145 = vmatprep.subr.mxu0 0.0
        %1146 = vmatpush1.msra.mxu0 0.0
        %1147 = vmatprep.subr.mxu0 0.0
        %1148 = vmatpush1.msra.mxu0 0.0
        %1149 = vmatprep.subr.mxu0 0.0
        %1150 = vmatpush1.msra.mxu0 0.0
        %1151 = vmatprep.subr.mxu0 0.0
        %1152 = vmatpush1.msra.mxu0 0.0
        %1153 = vmatprep.subr.mxu0 0.0
        %1154 = vmatpush1.msra.mxu0 0.0
        %1155 = vmatprep.subr.mxu0 0.0
        %1156 = vmatpush1.msra.mxu0 0.0
        %1157 = vmatprep.subr.mxu0 0.0
        %1158 = vmatpush1.msra.mxu0 0.0
        %1159 = vmatprep.subr.mxu0 0.0
        %1160 = vmatpush1.msra.mxu0 0.0
        %1161 = vmatprep.subr.mxu0 0.0
        %1162 = vmatpush1.msra.mxu0 0.0
        %1163 = vmatprep.subr.mxu0 0.0
        %1164 = vmatpush1.msra.mxu0 0.0
        %1165 = vmatprep.subr.mxu0 0.0
        %1166 = vmatpush1.msra.mxu0 0.0
        %1167 = vmatprep.subr.mxu0 0.0
        %1168 = vmatpush1.msra.mxu0 0.0
        %1169 = vmatprep.subr.mxu0 0.0
        %1170 = vmatpush1.msra.mxu0 0.0
        %1171 = vmatprep.subr.mxu0 0.0
        %1172 = vmatpush1.msra.mxu0 0.0
        %1173 = vmatprep.subr.mxu0 0.0
        %1174 = vmatpush1.msra.mxu0 0.0
        %1175 = vmatprep.subr.mxu0 0.0
        %1176 = vmatpush1.msra.mxu0 0.0
        %1177 = vmatprep.subr.mxu0 0.0
        %1178 = vmatpush1.msra.mxu0 0.0
        %1179 = vmatprep.subr.mxu0 0.0
        %1180 = vmatpush1.msra.mxu0 0.0
        %1181 = vmatprep.subr.mxu0 0.0
        %1182 = vmatpush1.msra.mxu0 0.0
        %1183 = vmatprep.subr.mxu0 0.0
        %1184 = vmatpush1.msra.mxu0 0.0
        %1185 = vmatprep.subr.mxu0 0.0
        %1186 = vmatpush1.msra.mxu0 0.0
        %1187 = vmatprep.subr.mxu0 0.0
        %1188 = vmatpush1.msra.mxu0 0.0
        %1189 = vmatprep.mubr.f32.mxu0 0.0
        %1190 = vmatmul.mubr.f32.gmra.mrb[0].mxu0 %v1123
        %v1191 = vpop.f32.mrb[0].mxu0
        %v1192 = vadd.f32 0.0, %v1191
        %v1193 = vpop.f32.mrb[0].mxu0
        %1194 = vdwg.mxu0
        %1195 = vrot.lane.b32.xlu0 %v867, 112
        %v1196 = vpop.permute.xlu0 %1195
        %1197 = vrot.lane.b32.xlu0 %v768, 112
        %v1198 = vpop.permute.xlu0 %1197
        %v1199 = vsel %vm868, %v1196, 0
        %v1201 = vsel %vm868, %v1198, 0
        %1203 = vmatprep.subr.mxu0 0.0
        %1204 = vmatpush1.xpose.msra.mxu0 %v1201
        %1205 = vmatprep.subr.mxu0 0.0
        %1206 = vmatpush1.xpose.msra.mxu0 0.0
        %1207 = vmatprep.subr.mxu0 0.0
        %1208 = vmatpush1.xpose.msra.mxu0 0.0
        %1209 = vmatprep.subr.mxu0 0.0
        %1210 = vmatpush1.xpose.msra.mxu0 0.0
        %1211 = vmatprep.subr.mxu0 0.0
        %1212 = vmatpush1.xpose.msra.mxu0 0.0
        %1213 = vmatprep.subr.mxu0 0.0
        %1214 = vmatpush1.xpose.msra.mxu0 0.0
        %1215 = vmatprep.subr.mxu0 0.0
        %1216 = vmatpush1.xpose.msra.mxu0 0.0
        %1217 = vmatprep.subr.mxu0 0.0
        %1218 = vmatpush1.xpose.msra.mxu0 0.0
        %1219 = vmatprep.subr.mxu0 0.0
        %1220 = vmatpush1.xpose.msra.mxu0 0.0
        %1221 = vmatprep.subr.mxu0 0.0
        %1222 = vmatpush1.xpose.msra.mxu0 0.0
        %1223 = vmatprep.subr.mxu0 0.0
        %1224 = vmatpush1.xpose.msra.mxu0 0.0
        %1225 = vmatprep.subr.mxu0 0.0
        %1226 = vmatpush1.xpose.msra.mxu0 0.0
        %1227 = vmatprep.subr.mxu0 0.0
        %1228 = vmatpush1.xpose.msra.mxu0 0.0
        %1229 = vmatprep.subr.mxu0 0.0
        %1230 = vmatpush1.xpose.msra.mxu0 0.0
        %1231 = vmatprep.subr.mxu0 0.0
        %1232 = vmatpush1.xpose.msra.mxu0 0.0
        %1233 = vmatprep.subr.mxu0 0.0
        %1234 = vmatpush1.xpose.msra.mxu0 0.0
        %1235 = vmatprep.subr.mxu0 0.0
        %1236 = vmatpush1.xpose.msra.mxu0 0.0
        %1237 = vmatprep.subr.mxu0 0.0
        %1238 = vmatpush1.xpose.msra.mxu0 0.0
        %1239 = vmatprep.subr.mxu0 0.0
        %1240 = vmatpush1.xpose.msra.mxu0 0.0
        %1241 = vmatprep.subr.mxu0 0.0
        %1242 = vmatpush1.xpose.msra.mxu0 0.0
        %1243 = vmatprep.subr.mxu0 0.0
        %1244 = vmatpush1.xpose.msra.mxu0 0.0
        %1245 = vmatprep.subr.mxu0 0.0
        %1246 = vmatpush1.xpose.msra.mxu0 0.0
        %1247 = vmatprep.subr.mxu0 0.0
        %1248 = vmatpush1.xpose.msra.mxu0 0.0
        %1249 = vmatprep.subr.mxu0 0.0
        %1250 = vmatpush1.xpose.msra.mxu0 0.0
        %1251 = vmatprep.subr.mxu0 0.0
        %1252 = vmatpush1.xpose.msra.mxu0 0.0
        %1253 = vmatprep.subr.mxu0 0.0
        %1254 = vmatpush1.xpose.msra.mxu0 0.0
        %1255 = vmatprep.subr.mxu0 0.0
        %1256 = vmatpush1.xpose.msra.mxu0 0.0
        %1257 = vmatprep.subr.mxu0 0.0
        %1258 = vmatpush1.xpose.msra.mxu0 0.0
        %1259 = vmatprep.subr.mxu0 0.0
        %1260 = vmatpush1.xpose.msra.mxu0 0.0
        %1261 = vmatprep.subr.mxu0 0.0
        %1262 = vmatpush1.xpose.msra.mxu0 0.0
        %1263 = vmatprep.subr.mxu0 0.0
        %1264 = vmatpush1.xpose.msra.mxu0 0.0
        %1265 = vmatprep.subr.mxu0 0.0
        %1266 = vmatpush1.xpose.msra.mxu0 0.0
        %1267 = vmatprep.mubr.f32.mxu0 0.0
        %1268 = vmatmul.mubr.f32.gmra.mrb[0].mxu0 %v1199
        %v1269 = vpop.f32.mrb[0].mxu0
        %v1270 = vadd.f32 0.0, %v1269
        %v1271 = vpop.f32.mrb[0].mxu0
        %1272 = vdwg.mxu0
        %v1273 = vsel %vm868, %v1270, -inf
        %1274 = vmax.xlane.f32.xlu0 %v1273
        %v1275 = vpop.xlane.xlu0 %1274
        %v1276 = vsub.f32 %v1270, %v1275
        %v1277 = vmul.f32 %v1276, 1.442695
        %v1278 = vpow.pop %v1277
        %v1279 = vsel %vm868, %v1278, 0.0
        %1280 = vadd.xlane.f32.xlu0 %v1279
        %v1281 = vpop.xlane.xlu0 %1280
        %v1282 = vrcp.pop %v1281
        %v1283 = vmul.f32 %v1278, %v1282
        %1284 = vrot.lane.b32.xlu0 %v864, 112
        %v1285 = vpop.permute.xlu0 %1284
        %v1288 = vsel %vm868, %v1283, 0
        %1290 = vmatprep.subr.mxu0 0.0
        %1291 = vmatpush1.msra.mxu0 %v1285
        %1292 = vmatprep.subr.mxu0 0.0
        %1293 = vmatpush1.msra.mxu0 0.0
        %1294 = vmatprep.subr.mxu0 0.0
        %1295 = vmatpush1.msra.mxu0 0.0
        %1296 = vmatprep.subr.mxu0 0.0
        %1297 = vmatpush1.msra.mxu0 0.0
        %1298 = vmatprep.subr.mxu0 0.0
        %1299 = vmatpush1.msra.mxu0 0.0
        %1300 = vmatprep.subr.mxu0 0.0
        %1301 = vmatpush1.msra.mxu0 0.0
        %1302 = vmatprep.subr.mxu0 0.0
        %1303 = vmatpush1.msra.mxu0 0.0
        %1304 = vmatprep.subr.mxu0 0.0
        %1305 = vmatpush1.msra.mxu0 0.0
        %1306 = vmatprep.subr.mxu0 0.0
        %1307 = vmatpush1.msra.mxu0 0.0
        %1308 = vmatprep.subr.mxu0 0.0
        %1309 = vmatpush1.msra.mxu0 0.0
        %1310 = vmatprep.subr.mxu0 0.0
        %1311 = vmatpush1.msra.mxu0 0.0
        %1312 = vmatprep.subr.mxu0 0.0
        %1313 = vmatpush1.msra.mxu0 0.0
        %1314 = vmatprep.subr.mxu0 0.0
        %1315 = vmatpush1.msra.mxu0 0.0
        %1316 = vmatprep.subr.mxu0 0.0
        %1317 = vmatpush1.msra.mxu0 0.0
        %1318 = vmatprep.subr.mxu0 0.0
        %1319 = vmatpush1.msra.mxu0 0.0
        %1320 = vmatprep.subr.mxu0 0.0
        %1321 = vmatpush1.msra.mxu0 0.0
        %1322 = vmatprep.subr.mxu0 0.0
        %1323 = vmatpush1.msra.mxu0 0.0
        %1324 = vmatprep.subr.mxu0 0.0
        %1325 = vmatpush1.msra.mxu0 0.0
        %1326 = vmatprep.subr.mxu0 0.0
        %1327 = vmatpush1.msra.mxu0 0.0
        %1328 = vmatprep.subr.mxu0 0.0
        %1329 = vmatpush1.msra.mxu0 0.0
        %1330 = vmatprep.subr.mxu0 0.0
        %1331 = vmatpush1.msra.mxu0 0.0
        %1332 = vmatprep.subr.mxu0 0.0
        %1333 = vmatpush1.msra.mxu0 0.0
        %1334 = vmatprep.subr.mxu0 0.0
        %1335 = vmatpush1.msra.mxu0 0.0
        %1336 = vmatprep.subr.mxu0 0.0
        %1337 = vmatpush1.msra.mxu0 0.0
        %1338 = vmatprep.subr.mxu0 0.0
        %1339 = vmatpush1.msra.mxu0 0.0
        %1340 = vmatprep.subr.mxu0 0.0
        %1341 = vmatpush1.msra.mxu0 0.0
        %1342 = vmatprep.subr.mxu0 0.0
        %1343 = vmatpush1.msra.mxu0 0.0
        %1344 = vmatprep.subr.mxu0 0.0
        %1345 = vmatpush1.msra.mxu0 0.0
        %1346 = vmatprep.subr.mxu0 0.0
        %1347 = vmatpush1.msra.mxu0 0.0
        %1348 = vmatprep.subr.mxu0 0.0
        %1349 = vmatpush1.msra.mxu0 0.0
        %1350 = vmatprep.subr.mxu0 0.0
        %1351 = vmatpush1.msra.mxu0 0.0
        %1352 = vmatprep.subr.mxu0 0.0
        %1353 = vmatpush1.msra.mxu0 0.0
        %1354 = vmatprep.mubr.f32.mxu0 0.0
        %1355 = vmatmul.mubr.f32.gmra.mrb[0].mxu0 %v1288
        %v1356 = vpop.f32.mrb[0].mxu0
        %v1357 = vadd.f32 0.0, %v1356
        %v1358 = vpop.f32.mrb[0].mxu0
        %1359 = vdwg.mxu0
        %1360 = vrot.lane.b32.xlu0 %v867, 104
        %v1361 = vpop.permute.xlu0 %1360
        %1362 = vrot.lane.b32.xlu0 %v768, 104
        %v1363 = vpop.permute.xlu0 %1362
        %v1364 = vsel %vm868, %v1361, 0
        %v1366 = vsel %vm868, %v1363, 0
        %1368 = vmatprep.subr.mxu0 0.0
        %1369 = vmatpush1.xpose.msra.mxu0 %v1366
        %1370 = vmatprep.subr.mxu0 0.0
        %1371 = vmatpush1.xpose.msra.mxu0 0.0
        %1372 = vmatprep.subr.mxu0 0.0
        %1373 = vmatpush1.xpose.msra.mxu0 0.0
        %1374 = vmatprep.subr.mxu0 0.0
        %1375 = vmatpush1.xpose.msra.mxu0 0.0
        %1376 = vmatprep.subr.mxu0 0.0
        %1377 = vmatpush1.xpose.msra.mxu0 0.0
        %1378 = vmatprep.subr.mxu0 0.0
        %1379 = vmatpush1.xpose.msra.mxu0 0.0
        %1380 = vmatprep.subr.mxu0 0.0
        %1381 = vmatpush1.xpose.msra.mxu0 0.0
        %1382 = vmatprep.subr.mxu0 0.0
        %1383 = vmatpush1.xpose.msra.mxu0 0.0
        %1384 = vmatprep.subr.mxu0 0.0
        %1385 = vmatpush1.xpose.msra.mxu0 0.0
        %1386 = vmatprep.subr.mxu0 0.0
        %1387 = vmatpush1.xpose.msra.mxu0 0.0
        %1388 = vmatprep.subr.mxu0 0.0
        %1389 = vmatpush1.xpose.msra.mxu0 0.0
        %1390 = vmatprep.subr.mxu0 0.0
        %1391 = vmatpush1.xpose.msra.mxu0 0.0
        %1392 = vmatprep.subr.mxu0 0.0
        %1393 = vmatpush1.xpose.msra.mxu0 0.0
        %1394 = vmatprep.subr.mxu0 0.0
        %1395 = vmatpush1.xpose.msra.mxu0 0.0
        %1396 = vmatprep.subr.mxu0 0.0
        %1397 = vmatpush1.xpose.msra.mxu0 0.0
        %1398 = vmatprep.subr.mxu0 0.0
        %1399 = vmatpush1.xpose.msra.mxu0 0.0
        %1400 = vmatprep.subr.mxu0 0.0
        %1401 = vmatpush1.xpose.msra.mxu0 0.0
        %1402 = vmatprep.subr.mxu0 0.0
        %1403 = vmatpush1.xpose.msra.mxu0 0.0
        %1404 = vmatprep.subr.mxu0 0.0
        %1405 = vmatpush1.xpose.msra.mxu0 0.0
        %1406 = vmatprep.subr.mxu0 0.0
        %1407 = vmatpush1.xpose.msra.mxu0 0.0
        %1408 = vmatprep.subr.mxu0 0.0
        %1409 = vmatpush1.xpose.msra.mxu0 0.0
        %1410 = vmatprep.subr.mxu0 0.0
        %1411 = vmatpush1.xpose.msra.mxu0 0.0
        %1412 = vmatprep.subr.mxu0 0.0
        %1413 = vmatpush1.xpose.msra.mxu0 0.0
        %1414 = vmatprep.subr.mxu0 0.0
        %1415 = vmatpush1.xpose.msra.mxu0 0.0
        %1416 = vmatprep.subr.mxu0 0.0
        %1417 = vmatpush1.xpose.msra.mxu0 0.0
        %1418 = vmatprep.subr.mxu0 0.0
        %1419 = vmatpush1.xpose.msra.mxu0 0.0
        %1420 = vmatprep.subr.mxu0 0.0
        %1421 = vmatpush1.xpose.msra.mxu0 0.0
        %1422 = vmatprep.subr.mxu0 0.0
        %1423 = vmatpush1.xpose.msra.mxu0 0.0
        %1424 = vmatprep.subr.mxu0 0.0
        %1425 = vmatpush1.xpose.msra.mxu0 0.0
        %1426 = vmatprep.subr.mxu0 0.0
        %1427 = vmatpush1.xpose.msra.mxu0 0.0
        %1428 = vmatprep.subr.mxu0 0.0
        %1429 = vmatpush1.xpose.msra.mxu0 0.0
        %1430 = vmatprep.subr.mxu0 0.0
        %1431 = vmatpush1.xpose.msra.mxu0 0.0
        %1432 = vmatprep.mubr.f32.mxu0 0.0
        %1433 = vmatmul.mubr.f32.gmra.mrb[0].mxu0 %v1364
        %v1434 = vpop.f32.mrb[0].mxu0
        %v1435 = vadd.f32 0.0, %v1434
        %v1436 = vpop.f32.mrb[0].mxu0
        %1437 = vdwg.mxu0
        %v1438 = vsel %vm868, %v1435, -inf
        %1439 = vmax.xlane.f32.xlu0 %v1438
        %v1440 = vpop.xlane.xlu0 %1439
        %v1441 = vsub.f32 %v1435, %v1440
        %v1442 = vmul.f32 %v1441, 1.442695
        %v1443 = vpow.pop %v1442
        %v1444 = vsel %vm868, %v1443, 0.0
        %1445 = vadd.xlane.f32.xlu0 %v1444
        %v1446 = vpop.xlane.xlu0 %1445
        %v1447 = vrcp.pop %v1446
        %v1448 = vmul.f32 %v1443, %v1447
        %1449 = vrot.lane.b32.xlu0 %v864, 104
        %v1450 = vpop.permute.xlu0 %1449
        %v1453 = vsel %vm868, %v1448, 0
        %1455 = vmatprep.subr.mxu0 0.0
        %1456 = vmatpush1.msra.mxu0 %v1450
        %1457 = vmatprep.subr.mxu0 0.0
        %1458 = vmatpush1.msra.mxu0 0.0
        %1459 = vmatprep.subr.mxu0 0.0
        %1460 = vmatpush1.msra.mxu0 0.0
        %1461 = vmatprep.subr.mxu0 0.0
        %1462 = vmatpush1.msra.mxu0 0.0
        %1463 = vmatprep.subr.mxu0 0.0
        %1464 = vmatpush1.msra.mxu0 0.0
        %1465 = vmatprep.subr.mxu0 0.0
        %1466 = vmatpush1.msra.mxu0 0.0
        %1467 = vmatprep.subr.mxu0 0.0
        %1468 = vmatpush1.msra.mxu0 0.0
        %1469 = vmatprep.subr.mxu0 0.0
        %1470 = vmatpush1.msra.mxu0 0.0
        %1471 = vmatprep.subr.mxu0 0.0
        %1472 = vmatpush1.msra.mxu0 0.0
        %1473 = vmatprep.subr.mxu0 0.0
        %1474 = vmatpush1.msra.mxu0 0.0
        %1475 = vmatprep.subr.mxu0 0.0
        %1476 = vmatpush1.msra.mxu0 0.0
        %1477 = vmatprep.subr.mxu0 0.0
        %1478 = vmatpush1.msra.mxu0 0.0
        %1479 = vmatprep.subr.mxu0 0.0
        %1480 = vmatpush1.msra.mxu0 0.0
        %1481 = vmatprep.subr.mxu0 0.0
        %1482 = vmatpush1.msra.mxu0 0.0
        %1483 = vmatprep.subr.mxu0 0.0
        %1484 = vmatpush1.msra.mxu0 0.0
        %1485 = vmatprep.subr.mxu0 0.0
        %1486 = vmatpush1.msra.mxu0 0.0
        %1487 = vmatprep.subr.mxu0 0.0
        %1488 = vmatpush1.msra.mxu0 0.0
        %1489 = vmatprep.subr.mxu0 0.0
        %1490 = vmatpush1.msra.mxu0 0.0
        %1491 = vmatprep.subr.mxu0 0.0
        %1492 = vmatpush1.msra.mxu0 0.0
        %1493 = vmatprep.subr.mxu0 0.0
        %1494 = vmatpush1.msra.mxu0 0.0
        %1495 = vmatprep.subr.mxu0 0.0
        %1496 = vmatpush1.msra.mxu0 0.0
        %1497 = vmatprep.subr.mxu0 0.0
        %1498 = vmatpush1.msra.mxu0 0.0
        %1499 = vmatprep.subr.mxu0 0.0
        %1500 = vmatpush1.msra.mxu0 0.0
        %1501 = vmatprep.subr.mxu0 0.0
        %1502 = vmatpush1.msra.mxu0 0.0
        %1503 = vmatprep.subr.mxu0 0.0
        %1504 = vmatpush1.msra.mxu0 0.0
        %1505 = vmatprep.subr.mxu0 0.0
        %1506 = vmatpush1.msra.mxu0 0.0
        %1507 = vmatprep.subr.mxu0 0.0
        %1508 = vmatpush1.msra.mxu0 0.0
        %1509 = vmatprep.subr.mxu0 0.0
        %1510 = vmatpush1.msra.mxu0 0.0
        %1511 = vmatprep.subr.mxu0 0.0
        %1512 = vmatpush1.msra.mxu0 0.0
        %1513 = vmatprep.subr.mxu0 0.0
        %1514 = vmatpush1.msra.mxu0 0.0
        %1515 = vmatprep.subr.mxu0 0.0
        %1516 = vmatpush1.msra.mxu0 0.0
        %1517 = vmatprep.subr.mxu0 0.0
        %1518 = vmatpush1.msra.mxu0 0.0
        %1519 = vmatprep.mubr.f32.mxu0 0.0
        %1520 = vmatmul.mubr.f32.gmra.mrb[0].mxu0 %v1453
        %v1521 = vpop.f32.mrb[0].mxu0
        %v1522 = vadd.f32 0.0, %v1521
        %v1523 = vpop.f32.mrb[0].mxu0
        %1524 = vdwg.mxu0
        %1525 = vst.msk [vmem:[%s570] sm:$0xff] %vm868, %v955
        %1526 = vst.msk [vmem:[%s570 + $0x8] sm:$0xff] %vm868, %v1117
        %1527 = vst.msk [vmem:[%s570 + $0x10] sm:$0xff] %vm868, %v1283
        %1528 = vst.msk [vmem:[%s570 + $0x18] sm:$0xff] %vm868, %v1448
        %1530 = vrot.lane.b32.xlu0 %v1192, 8
        %v1531 = vpop.permute.xlu0 %1530
        %1534 = vrot.lane.b32.xlu0 %v1357, 16
        %v1535 = vpop.permute.xlu0 %1534
        %1538 = vrot.lane.b32.xlu0 %v1522, 24
        %v1539 = vpop.permute.xlu0 %1538
        %v1541 = vsel %vm868, %v1026, %v1531
        %vm1542 = vcmask 130048
        %v1543 = vsel %vm1542, %v1541, %v1535
        %vm1544 = vcmask 195584
        %v1545 = vsel %vm1544, %v1543, %v1539
        %v1546 = vld [vmem:[#allocation13] sm:$0xff]
        %v1547 = vld [vmem:[#allocation13 + $0x8] sm:$0xff]
        %v1548 = vld [vmem:[#allocation13 + $0x10] sm:$0xff]
        %v1549 = vld [vmem:[#allocation13 + $0x18] sm:$0xff]
        %v1550 = vld [vmem:[#allocation14] sm:$0x1]
        %v1552 = vlaneseq
        %v1553 = vshrl.u32 %v1552, 7
        %v1554 = vsub.s32 0, %v1553
        %v1555 = vrot.slane %v1550, %v1554
        %v1558 = vsel %vm589, %v1545, 0
        %v1561 = vsel %vm589, %v1546, 0
        %v1564 = vsel %vm589, %v1547, 0
        %v1567 = vsel %vm589, %v1548, 0
        %v1570 = vsel %vm589, %v1549, 0
        %1572 = vmatprep.subr.mxu0 0.0
        %1573 = vmatpush1.xpose.msra.mxu0 %v1561
        %1574 = vmatprep.subr.mxu0 0.0
        %1575 = vmatpush1.xpose.msra.mxu0 %v1564
        %1576 = vmatprep.subr.mxu0 0.0
        %1577 = vmatpush1.xpose.msra.mxu0 %v1567
        %1578 = vmatprep.subr.mxu0 0.0
        %1579 = vmatpush1.xpose.msra.mxu0 %v1570
        %1580 = vmatprep.subr.mxu0 0.0
        %1581 = vmatpush1.xpose.msra.mxu0 0.0
        %1582 = vmatprep.subr.mxu0 0.0
        %1583 = vmatpush1.xpose.msra.mxu0 0.0
        %1584 = vmatprep.subr.mxu0 0.0
        %1585 = vmatpush1.xpose.msra.mxu0 0.0
        %1586 = vmatprep.subr.mxu0 0.0
        %1587 = vmatpush1.xpose.msra.mxu0 0.0
        %1588 = vmatprep.subr.mxu0 0.0
        %1589 = vmatpush1.xpose.msra.mxu0 0.0
        %1590 = vmatprep.subr.mxu0 0.0
        %1591 = vmatpush1.xpose.msra.mxu0 0.0
        %1592 = vmatprep.subr.mxu0 0.0
        %1593 = vmatpush1.xpose.msra.mxu0 0.0
        %1594 = vmatprep.subr.mxu0 0.0
        %1595 = vmatpush1.xpose.msra.mxu0 0.0
        %1596 = vmatprep.subr.mxu0 0.0
        %1597 = vmatpush1.xpose.msra.mxu0 0.0
        %1598 = vmatprep.subr.mxu0 0.0
        %1599 = vmatpush1.xpose.msra.mxu0 0.0
        %1600 = vmatprep.subr.mxu0 0.0
        %1601 = vmatpush1.xpose.msra.mxu0 0.0
        %1602 = vmatprep.subr.mxu0 0.0
        %1603 = vmatpush1.xpose.msra.mxu0 0.0
        %1604 = vmatprep.subr.mxu0 0.0
        %1605 = vmatpush1.xpose.msra.mxu0 0.0
        %1606 = vmatprep.subr.mxu0 0.0
        %1607 = vmatpush1.xpose.msra.mxu0 0.0
        %1608 = vmatprep.subr.mxu0 0.0
        %1609 = vmatpush1.xpose.msra.mxu0 0.0
        %1610 = vmatprep.subr.mxu0 0.0
        %1611 = vmatpush1.xpose.msra.mxu0 0.0
        %1612 = vmatprep.subr.mxu0 0.0
        %1613 = vmatpush1.xpose.msra.mxu0 0.0
        %1614 = vmatprep.subr.mxu0 0.0
        %1615 = vmatpush1.xpose.msra.mxu0 0.0
        %1616 = vmatprep.subr.mxu0 0.0
        %1617 = vmatpush1.xpose.msra.mxu0 0.0
        %1618 = vmatprep.subr.mxu0 0.0
        %1619 = vmatpush1.xpose.msra.mxu0 0.0
        %1620 = vmatprep.subr.mxu0 0.0
        %1621 = vmatpush1.xpose.msra.mxu0 0.0
        %1622 = vmatprep.subr.mxu0 0.0
        %1623 = vmatpush1.xpose.msra.mxu0 0.0
        %1624 = vmatprep.subr.mxu0 0.0
        %1625 = vmatpush1.xpose.msra.mxu0 0.0
        %1626 = vmatprep.subr.mxu0 0.0
        %1627 = vmatpush1.xpose.msra.mxu0 0.0
        %1628 = vmatprep.subr.mxu0 0.0
        %1629 = vmatpush1.xpose.msra.mxu0 0.0
        %1630 = vmatprep.subr.mxu0 0.0
        %1631 = vmatpush1.xpose.msra.mxu0 0.0
        %1632 = vmatprep.subr.mxu0 0.0
        %1633 = vmatpush1.xpose.msra.mxu0 0.0
        %1634 = vmatprep.subr.mxu0 0.0
        %1635 = vmatpush1.xpose.msra.mxu0 0.0
        %1636 = vmatprep.mubr.f32.mxu0 0.0
        %1637 = vmatmul.mubr.f32.gmra.mrb[0].mxu0 %v1558
        %v1638 = vpop.f32.mrb[0].mxu0
        %v1639 = vadd.f32 %v1555, %v1638
        %v1640 = vpop.f32.mrb[0].mxu0
        %1641 = vdwg.mxu0
        %1642 = vst.msk [vmem:[%s563] sm:$0xff] %vm589, %v1639
        %s1643 = sand.u32 %s293, 1
        %s1644 = scalar_lea.sflag [#allocation4], %s1643
        %s1645 = sand.u32 %s293, 1
        %s1646 = smul.addr %s1645, 8
        %s1647 = scalar_lea.vmem [#allocation16], %s1646
        %s1648 = sand.u32 %s319, 1
        %s1649 = scalar_lea.sflag [#allocation18], %s1648
        %s1650 = sand.u32 %s319, 1
        %s1651 = smul.addr %s1650, 32
        %s1652 = scalar_lea.vmem [#allocation17], %s1651
        // Predicated region
        $region97: #{multihead_attention_forward.1} parent=63 // pred_check
          %p1653 = pneg %p303
        $region98: #{multihead_attention_forward.1} parent=63 // pred_check_branch
          %1655 = sbr.rel (%p1653) target = $region100
        $region99: #{multihead_attention_forward.1} parent=63 // pred_region
          %s1657 = ssub.s32 128, 128
          %1658 = vsyncadd %s1644, %s1657
          %s1659 = smul.addr %s39, 128
          %s1660 = scalar_lea.hbm %s11, %s1659
          %s1662 = sshll.u32 %s1647, 4
          %s1663 = int_to_ptr.vmem [resolvable:$true] %s1662
          %1665 = dma.vmem_to_hbm [thread:$0]  %s1663, 128, %s1660, %s1644
        $region100: #{multihead_attention_forward.1} parent=63 // pred_fallthru
          _
        // Predicated region
        $region101: #{multihead_attention_forward.1} parent=63 // pred_check
          %p1666 = pneg %p329
        $region102: #{multihead_attention_forward.1} parent=63 // pred_check_branch
          %1668 = sbr.rel (%p1666) target = $region104
        $region103: #{multihead_attention_forward.1} parent=63 // pred_region
          %s1670 = ssub.s32 512, 512
          %1671 = vsyncadd %s1649, %s1670
          %s1672 = smul.addr %s39, 4
          %s1673 = smul.addr %s1672, 128
          %s1674 = scalar_lea.hbm %s12, %s1673
          %s1675 = sshll.u32 %s1652, 4
          %s1676 = int_to_ptr.vmem [resolvable:$true] %s1675
          %1681 = dma.vmem_to_hbm [thread:$0]  %s1676, 512, %s1674, %s1649, 128, 128, 8
        $region104: #{multihead_attention_forward.1} parent=63 // pred_fallthru
          _
      $region64: #{multihead_attention_forward.1} parent=5 // pred_fallthru
        _
      %p1682 = scmp.le.s32.totalorder 2, %s34
      // Predicated region
      $region105: #{multihead_attention_forward.1} parent=5 // pred_check
        %p1683 = pneg %p1682
      $region106: #{multihead_attention_forward.1} parent=5 // pred_check_branch
        %1685 = sbr.rel (%p1683) target = $region108
      $region107: #{multihead_attention_forward.1} parent=5 // pred_region
        %s1686 = ssub.s32 %s34, 2
        // Predicated region
        $region109: #{multihead_attention_forward.1} parent=107 // pred_check
          %p1687 = pneg %p309
        $region110: #{multihead_attention_forward.1} parent=107 // pred_check_branch
          %1689 = sbr.rel (%p1687) target = $region112
        $region111: #{multihead_attention_forward.1} parent=107 // pred_region
          %s1690 = sand.u32 %s294, 1
          %s1691 = scalar_lea.sflag [#allocation4], %s1690
          %s1692 = sand.u32 %s294, 1
          %s1693 = smul.addr %s1692, 8
          %s1694 = scalar_lea.vmem [#allocation16], %s1693
          %1695 = dma.done %s1691, 128
        $region112: #{multihead_attention_forward.1} parent=107 // pred_fallthru
          _
        // Predicated region
        $region113: #{multihead_attention_forward.1} parent=107 // pred_check
          %p1696 = pneg %p335
        $region114: #{multihead_attention_forward.1} parent=107 // pred_check_branch
          %1698 = sbr.rel (%p1696) target = $region116
        $region115: #{multihead_attention_forward.1} parent=107 // pred_region
          %s1699 = sand.u32 %s320, 1
          %s1700 = scalar_lea.sflag [#allocation18], %s1699
          %s1701 = sand.u32 %s320, 1
          %s1702 = smul.addr %s1701, 32
          %s1703 = scalar_lea.vmem [#allocation17], %s1702
          %1704 = dma.done %s1700, 512
        $region116: #{multihead_attention_forward.1} parent=107 // pred_fallthru
          _
      $region108: #{multihead_attention_forward.1} parent=5 // pred_fallthru
        _
    $region6: #{multihead_attention_forward.1} parent=1 // loop_footer
      %s38 = sadd.s32 1, %s34
    $region7: #{multihead_attention_forward.1} parent=1 // loop_footer_branch
      %33 = sbr.rel target = $region3
    $region8: #{multihead_attention_forward.1} parent=1 // loop_exit
      _
    %1705 = vsyncpa [#allocation3], 1
    %s1706 = scalar_lea.sflag [#allocation3], 1
    %1707 = vsyncpa %s1706, 1
    %1708 = vsyncpa [#allocation6], 1
    %s1709 = scalar_lea.sflag [#allocation6], 1
    %1710 = vsyncpa %s1709, 1
    %1711 = vsyncpa [#allocation9], 1
    %1712 = vsyncpa [#allocation12], 1
    %1713 = vsyncpa [#allocation15], 1
    %1714 = vsyncpa [#allocation4], 1
    %s1715 = scalar_lea.sflag [#allocation4], 1
    %1716 = vsyncpa %s1715, 1
    %1717 = vsyncpa [#allocation18], 1
    %s1718 = scalar_lea.sflag [#allocation18], 1
    %1719 = vsyncpa %s1718, 1

</llo_original>
